<compile_context>
chip_gen: v7x
topology: tpu7x:2x2x1
jax: 0.10.0
libtpu: 0.0.40
codegen_flags: <defaults>
</compile_context>

<pallas_src>
import functools

import jax
import jax.numpy as jnp
from jax.experimental import pallas as pl
from jax.experimental.pallas import tpu as pltpu


LEAK = 0.1


# ---------------------------------------------------------------------------
# Fused kernel: shared stack + value stack + ALL advantage branches (N-fused)
# ---------------------------------------------------------------------------
def bdq_kernel(n_shared, n_value_hidden, n_branch, n_br, a_pad, actions,
               x_ref, *refs):
    idx = 0
    ws_refs = refs[idx:idx + n_shared]; idx += n_shared
    wv_refs = refs[idx:idx + n_value_hidden]; idx += n_value_hidden
    wv_last_ref = refs[idx]; idx += 1          # (1, branch[-1]) f32 value-head row
    svb_ref = refs[idx]; idx += 1              # (n_shared+n_value_hidden+1, W) f32 biases
    wb_refs = refs[idx:idx + n_branch]; idx += n_branch
    bb_ref = refs[idx]; idx += 1               # (n_branch, n_br*Wb) f32 branch biases
    out_ref = refs[idx]                        # (B, n_br*a_pad) f32

    svb = svb_ref[...]
    bb = bb_ref[...]

    def lrelu(x):
        return jnp.maximum(x, LEAK * x)        # 2 VALU ops instead of 3

    def dense(h, w, b, act):
        # bf16 matmul operands, f32 accumulation, f32 elementwise.
        y = jnp.dot(h.astype(w.dtype), w, preferred_element_type=jnp.float32) + b
        return lrelu(y) if act else y

    # ---- Shared stack (computed once) ----
    h = x_ref[...]
    for j in range(n_shared):
        w = ws_refs[j][...]
        h = dense(h, w, svb[j:j + 1, :w.shape[1]], act=True)

    # ---- State-value stack ----
    v = h
    for j in range(n_value_hidden):
        w = wv_refs[j][...]
        v = dense(v, w, svb[n_shared + j:n_shared + j + 1, :w.shape[1]], act=True)
    # Value head (D -> 1): VPU multiply + lane reduce instead of an N=1 matmul.
    wv_row = wv_last_ref[...]                                        # (1, D) f32
    b_v = svb[n_shared + n_value_hidden:n_shared + n_value_hidden + 1, 0:1]
    v = jnp.sum(v * wv_row, axis=-1, keepdims=True) + b_v            # (B, 1)

    # ---- All advantage branches, fused along N ----
    a = h
    for j in range(n_branch):
        w = wb_refs[j][...]
        a = dense(a, w, bb[j:j + 1, :w.shape[1]], act=(j < n_branch - 1))
    # a: (B, n_br * a_pad); padded final-layer columns are exactly zero
    # (zero weight columns + zero bias lanes, no activation on the last layer).

    # ---- Dueling epilogue per branch ----
    for i in range(n_br):
        blk = a[:, i * a_pad:(i + 1) * a_pad]
        # Exact mean over the valid sub-actions: padded columns are exactly 0,
        # so the full-block sum times the static reciprocal count is exact.
        mean_i = jnp.sum(blk, axis=-1, keepdims=True) * (1.0 / float(actions[i]))
        out_ref[:, i * a_pad:(i + 1) * a_pad] = v + blk - mean_i


# ---------------------------------------------------------------------------
# Parameter construction (deterministic, PyTorch-Linear-like uniform init)
# ---------------------------------------------------------------------------
def _linear_params(key, fan_in, fan_out):
    kw, kb = jax.random.split(key)
    bound = 1.0 / jnp.sqrt(jnp.float32(fan_in))
    w = jax.random.uniform(kw, (fan_in, fan_out), jnp.float32, -bound, bound)  # (in, out)
    b = jax.random.uniform(kb, (1, fan_out), jnp.float32, -bound, bound)
    return w, b


def init_bdq_params(key, state_dim, actions, shared=(512, 512), branch=(128, 128)):
    n_layers = len(shared) + (len(branch) + 1) * (1 + len(actions))
    keys = jax.random.split(key, n_layers)
    ki = iter(keys)

    shared_dims = (state_dim,) + tuple(shared)
    shared_params = [_linear_params(next(ki), shared_dims[i], shared_dims[i + 1])
                     for i in range(len(shared))]

    value_dims = (shared[-1],) + tuple(branch) + (1,)
    value_params = [_linear_params(next(ki), value_dims[i], value_dims[i + 1])
                    for i in range(len(value_dims) - 1)]

    branch_params = []
    for a in actions:
        dims = (shared[-1],) + tuple(branch) + (a,)
        branch_params.append(
            [_linear_params(next(ki), dims[i], dims[i + 1])
             for i in range(len(dims) - 1)])
    return shared_params, value_params, branch_params


def pack_bdq_params(shared_params, value_params, branch_params, actions):
    """Pack parameters into the kernel layout (bf16 weights, N-fused branches)."""
    actions = tuple(int(a) for a in actions)
    n_shared = len(shared_params)
    n_value_hidden = len(value_params) - 1
    n_br = len(branch_params)
    nb = len(branch_params[0])                       # layers per branch stack
    a_pad = max(128, -(-max(actions) // 128) * 128)  # lane-dense final width

    ws_list = [w.astype(jnp.bfloat16) for w, _ in shared_params]
    wv_list = [w.astype(jnp.bfloat16) for w, _ in value_params[:-1]]
    # Value head column kept f32 as a row vector (VPU multiply + reduce path).
    wv_last = value_params[-1][0].reshape(1, -1).astype(jnp.float32)

    # Shared + value-hidden biases packed row-per-layer; value-head bias at the
    # last row, column 0.
    sv_biases = [b for _, b in shared_params] + [b for _, b in value_params[:-1]]
    w_sv = max(128, max(int(b.shape[1]) for b in sv_biases))
    sv_b = jnp.zeros((n_shared + n_value_hidden + 1, w_sv), jnp.float32)
    for r, b in enumerate(sv_biases):
        sv_b = sv_b.at[r, :b.shape[1]].set(b[0])
    sv_b = sv_b.at[n_shared + n_value_hidden, 0].set(value_params[-1][1][0, 0])

    # Branch stacks fused along the lane (N) dimension:
    #   layer 0       : [shared_out, n_br*w0]  (all branches share the same input)
    #   hidden layers : block-diagonal [n_br*w_{j-1}, n_br*w_j]
    #   final layer   : block-diagonal, each block zero-padded to a_pad lanes
    wb_list, widths = [], []
    for j in range(nb):
        is_last = (j == nb - 1)
        out_w = [int(p[j][0].shape[1]) for p in branch_params]
        in_w = int(branch_params[0][j][0].shape[0])
        pad_w = a_pad if is_last else out_w[0]
        widths.append(pad_w)
        if j == 0:
            W = jnp.zeros((in_w, n_br * pad_w), jnp.float32)
            for i, p in enumerate(branch_params):
                W = W.at[:, i * pad_w:i * pad_w + out_w[i]].set(p[j][0])
        else:
            W = jnp.zeros((n_br * in_w, n_br * pad_w), jnp.float32)
            for i, p in enumerate(branch_params):
                W = W.at[i * in_w:(i + 1) * in_w,
                         i * pad_w:i * pad_w + out_w[i]].set(p[j][0])
        wb_list.append(W.astype(jnp.bfloat16))

    # Branch biases, one packed row per layer; padded lanes stay exactly zero so
    # the kernel's full-block-sum / true-count mean stays exact.
    w_bb = n_br * max(widths)
    bb = jnp.zeros((nb, w_bb), jnp.float32)
    for j in range(nb):
        pad_w = widths[j]
        for i, p in enumerate(branch_params):
            bias = p[j][1][0]
            bb = bb.at[j, i * pad_w:i * pad_w + bias.shape[0]].set(bias)

    return ws_list, wv_list, wv_last, sv_b, wb_list, bb, a_pad


# ---------------------------------------------------------------------------
# Wrapper that mirrors Network.forward
# ---------------------------------------------------------------------------
def bdq_forward(state, packed, actions):
    ws_list, wv_list, wv_last, sv_b, wb_list, bb, a_pad = packed
    B = state.shape[0]
    n_br = len(actions)
    ns, nvh, nb = len(ws_list), len(wv_list), len(wb_list)

    def spec(arr):
        n = arr.ndim
        return pl.BlockSpec(tuple(arr.shape), lambda i, _n=n: (0,) * _n)

    in_arrays = [state, *ws_list, *wv_list, wv_last, sv_b, *wb_list, bb]
    in_specs = [spec(a) for a in in_arrays]
    out_spec = pl.BlockSpec((B, n_br * a_pad), lambda i: (0, 0))

    kernel = functools.partial(bdq_kernel, ns, nvh, nb, n_br, a_pad, tuple(actions))
    out = pl.pallas_call(
        kernel,
        out_shape=jax.ShapeDtypeStruct((B, n_br * a_pad), jnp.float32),
        grid_spec=pltpu.PrefetchScalarGridSpec(
            num_scalar_prefetch=0,
            grid=(1,),
            in_specs=in_specs,
            out_specs=out_spec,
        ),
        compiler_params=pltpu.CompilerParams(
            dimension_semantics=("arbitrary",)),
    )(*in_arrays)

    # Slice the lane-dense slab back into the per-branch outputs.
    return [out[:, i * a_pad:i * a_pad + a] for i, a in enumerate(actions)]


# ---------------------------------------------------------------------------
# Pure-JAX reference with matching numerics (bf16 matmul operands, f32 acc)
# ---------------------------------------------------------------------------
def bdq_forward_ref(state, shared_params, value_params, branch_params):
    def lrelu(x):
        return jnp.maximum(x, LEAK * x)

    def dense_bf16(h, w, b, act):
        y = jnp.dot(h.astype(jnp.bfloat16), w.astype(jnp.bfloat16),
                    preferred_element_type=jnp.float32) + b
        return lrelu(y) if act else y

    h = state
    for w, b in shared_params:
        h = dense_bf16(h, w, b, act=True)
    v = h
    for w, b in value_params[:-1]:
        v = dense_bf16(v, w, b, act=True)
    w_last, b_last = value_params[-1]
    v = jnp.dot(v, w_last) + b_last           # f32 value head (matches kernel path)
    outs = []
    for params in branch_params:
        a = h
        for j, (w, b) in enumerate(params):
            a = dense_bf16(a, w, b, act=(j < len(params) - 1))
        outs.append(v + a - jnp.mean(a, axis=-1, keepdims=True))
    return outs


if __name__ == "__main__":
    # Small shapes consistent with the module's forward (2D batch of states).
    B = 64                   # fills MXU rows far better than B=8; still small
    STATE_DIM = 32
    SHARED = (128, 128)
    BRANCH = (128, 128)
    ACTIONS = (8, 6, 4)      # three action branches with different subaction counts

    key = jax.random.PRNGKey(0)
    k_params, k_state = jax.random.split(key)
    shared_p, value_p, branch_p = init_bdq_params(
        k_params, STATE_DIM, ACTIONS, shared=SHARED, branch=BRANCH)
    packed = pack_bdq_params(shared_p, value_p, branch_p, ACTIONS)
    state = jax.random.normal(k_state, (B, STATE_DIM), jnp.float32)

    outs = bdq_forward(state, packed, ACTIONS)
    outs = [jax.block_until_ready(o) for o in outs]

    refs = bdq_forward_ref(state, shared_p, value_p, branch_p)
    for o, r, a in zip(outs, refs, ACTIONS):
        assert o.shape == (B, a), (o.shape, (B, a))
        err = float(jnp.max(jnp.abs(o - r)))
        assert jnp.allclose(o, r, atol=2e-3, rtol=2e-3), f"mismatch vs reference: {err}"

    print("KERNEL_OK")
</pallas_src>

<mosaic_0001>
module attributes {stable_mosaic.version = 11 : i64} {
  func.func @bdq_kernel(%arg0: i32, %arg1: memref<64x32xf32, #tpu.memory_space<vmem>>, %arg2: memref<32x128xbf16, #tpu.memory_space<vmem>>, %arg3: memref<128x128xbf16, #tpu.memory_space<vmem>>, %arg4: memref<128x128xbf16, #tpu.memory_space<vmem>>, %arg5: memref<128x128xbf16, #tpu.memory_space<vmem>>, %arg6: memref<1x128xf32, #tpu.memory_space<vmem>>, %arg7: memref<5x128xf32, #tpu.memory_space<vmem>>, %arg8: memref<128x384xbf16, #tpu.memory_space<vmem>>, %arg9: memref<384x384xbf16, #tpu.memory_space<vmem>>, %arg10: memref<384x384xbf16, #tpu.memory_space<vmem>>, %arg11: memref<3x384xf32, #tpu.memory_space<vmem>>, %arg12: memref<64x384xf32, #tpu.memory_space<vmem>>) attributes {dimension_semantics = [#tpu.dimension_semantics<arbitrary>], iteration_bounds = array<i64: 1>, scalar_prefetch = 0 : i64, scratch_operands = 0 : i64, tpu.core_type = #tpu.core_type<tc>, window_params = [{pipeline_mode = #tpu.pipeline_mode<synchronous>, transform_indices = @transform_0, window_bounds = array<i64: 64, 32>}, {pipeline_mode = #tpu.pipeline_mode<synchronous>, transform_indices = @transform_1, window_bounds = array<i64: 32, 128>}, {pipeline_mode = #tpu.pipeline_mode<synchronous>, transform_indices = @transform_2, window_bounds = array<i64: 128, 128>}, {pipeline_mode = #tpu.pipeline_mode<synchronous>, transform_indices = @transform_3, window_bounds = array<i64: 128, 128>}, {pipeline_mode = #tpu.pipeline_mode<synchronous>, transform_indices = @transform_4, window_bounds = array<i64: 128, 128>}, {pipeline_mode = #tpu.pipeline_mode<synchronous>, transform_indices = @transform_5, window_bounds = array<i64: 1, 128>}, {pipeline_mode = #tpu.pipeline_mode<synchronous>, transform_indices = @transform_6, window_bounds = array<i64: 5, 128>}, {pipeline_mode = #tpu.pipeline_mode<synchronous>, transform_indices = @transform_7, window_bounds = array<i64: 128, 384>}, {pipeline_mode = #tpu.pipeline_mode<synchronous>, transform_indices = @transform_8, window_bounds = array<i64: 384, 384>}, {pipeline_mode = #tpu.pipeline_mode<synchronous>, transform_indices = @transform_9, window_bounds = array<i64: 384, 384>}, {pipeline_mode = #tpu.pipeline_mode<synchronous>, transform_indices = @transform_10, window_bounds = array<i64: 3, 384>}, {pipeline_mode = #tpu.pipeline_mode<synchronous>, transform_indices = @transform_11, window_bounds = array<i64: 64, 384>}]} {
    %c0 = arith.constant 0 : index
    %c0_0 = arith.constant 0 : index
    %0 = vector.load %arg7[%c0, %c0_0] : memref<5x128xf32, #tpu.memory_space<vmem>>, vector<5x128xf32>
    %c0_1 = arith.constant 0 : index
    %c0_2 = arith.constant 0 : index
    %1 = vector.load %arg11[%c0_1, %c0_2] : memref<3x384xf32, #tpu.memory_space<vmem>>, vector<3x384xf32>
    %c0_3 = arith.constant 0 : index
    %c0_4 = arith.constant 0 : index
    %2 = vector.load %arg1[%c0_3, %c0_4] : memref<64x32xf32, #tpu.memory_space<vmem>>, vector<64x32xf32>
    %c0_5 = arith.constant 0 : index
    %c0_6 = arith.constant 0 : index
    %3 = vector.load %arg2[%c0_5, %c0_6] : memref<32x128xbf16, #tpu.memory_space<vmem>>, vector<32x128xbf16>
    %4 = vector.extract_strided_slice %0 {offsets = [0, 0], sizes = [1, 128], strides = [1, 1]} : vector<5x128xf32> to vector<1x128xf32>
    %5 = arith.truncf %2 : vector<64x32xf32> to vector<64x32xbf16>
    %cst = arith.constant dense<0.000000e+00> : vector<64x128xf32>
    %6 = tpu.matmul %5, %3, %cst {dimension_numbers = #tpu.dot_dimension_numbers<[1], [0], [0], [1], [0, 0, 1, 1], [], []>} : vector<64x32xbf16>, vector<32x128xbf16>, vector<64x128xf32> -> vector<64x128xf32>
    %7 = vector.broadcast %4 : vector<1x128xf32> to vector<64x128xf32>
    %8 = arith.addf %6, %7 : vector<64x128xf32>
    %cst_7 = arith.constant 1.000000e-01 : f32
    %9 = vector.broadcast %cst_7 : f32 to vector<64x128xf32>
    %10 = arith.mulf %9, %8 : vector<64x128xf32>
    %11 = arith.maximumf %8, %10 : vector<64x128xf32>
    %c0_8 = arith.constant 0 : index
    %c0_9 = arith.constant 0 : index
    %12 = vector.load %arg3[%c0_8, %c0_9] : memref<128x128xbf16, #tpu.memory_space<vmem>>, vector<128x128xbf16>
    %13 = vector.extract_strided_slice %0 {offsets = [1, 0], sizes = [1, 128], strides = [1, 1]} : vector<5x128xf32> to vector<1x128xf32>
    %14 = arith.truncf %11 : vector<64x128xf32> to vector<64x128xbf16>
    %cst_10 = arith.constant dense<0.000000e+00> : vector<64x128xf32>
    %15 = tpu.matmul %14, %12, %cst_10 {dimension_numbers = #tpu.dot_dimension_numbers<[1], [0], [0], [1], [0, 0, 1, 1], [], []>} : vector<64x128xbf16>, vector<128x128xbf16>, vector<64x128xf32> -> vector<64x128xf32>
    %16 = vector.broadcast %13 : vector<1x128xf32> to vector<64x128xf32>
    %17 = arith.addf %15, %16 : vector<64x128xf32>
    %cst_11 = arith.constant 1.000000e-01 : f32
    %18 = vector.broadcast %cst_11 : f32 to vector<64x128xf32>
    %19 = arith.mulf %18, %17 : vector<64x128xf32>
    %20 = arith.maximumf %17, %19 : vector<64x128xf32>
    %c0_12 = arith.constant 0 : index
    %c0_13 = arith.constant 0 : index
    %21 = vector.load %arg4[%c0_12, %c0_13] : memref<128x128xbf16, #tpu.memory_space<vmem>>, vector<128x128xbf16>
    %22 = vector.extract_strided_slice %0 {offsets = [2, 0], sizes = [1, 128], strides = [1, 1]} : vector<5x128xf32> to vector<1x128xf32>
    %23 = arith.truncf %20 : vector<64x128xf32> to vector<64x128xbf16>
    %cst_14 = arith.constant dense<0.000000e+00> : vector<64x128xf32>
    %24 = tpu.matmul %23, %21, %cst_14 {dimension_numbers = #tpu.dot_dimension_numbers<[1], [0], [0], [1], [0, 0, 1, 1], [], []>} : vector<64x128xbf16>, vector<128x128xbf16>, vector<64x128xf32> -> vector<64x128xf32>
    %25 = vector.broadcast %22 : vector<1x128xf32> to vector<64x128xf32>
    %26 = arith.addf %24, %25 : vector<64x128xf32>
    %cst_15 = arith.constant 1.000000e-01 : f32
    %27 = vector.broadcast %cst_15 : f32 to vector<64x128xf32>
    %28 = arith.mulf %27, %26 : vector<64x128xf32>
    %29 = arith.maximumf %26, %28 : vector<64x128xf32>
    %c0_16 = arith.constant 0 : index
    %c0_17 = arith.constant 0 : index
    %30 = vector.load %arg5[%c0_16, %c0_17] : memref<128x128xbf16, #tpu.memory_space<vmem>>, vector<128x128xbf16>
    %31 = vector.extract_strided_slice %0 {offsets = [3, 0], sizes = [1, 128], strides = [1, 1]} : vector<5x128xf32> to vector<1x128xf32>
    %32 = arith.truncf %29 : vector<64x128xf32> to vector<64x128xbf16>
    %cst_18 = arith.constant dense<0.000000e+00> : vector<64x128xf32>
    %33 = tpu.matmul %32, %30, %cst_18 {dimension_numbers = #tpu.dot_dimension_numbers<[1], [0], [0], [1], [0, 0, 1, 1], [], []>} : vector<64x128xbf16>, vector<128x128xbf16>, vector<64x128xf32> -> vector<64x128xf32>
    %34 = vector.broadcast %31 : vector<1x128xf32> to vector<64x128xf32>
    %35 = arith.addf %33, %34 : vector<64x128xf32>
    %cst_19 = arith.constant 1.000000e-01 : f32
    %36 = vector.broadcast %cst_19 : f32 to vector<64x128xf32>
    %37 = arith.mulf %36, %35 : vector<64x128xf32>
    %38 = arith.maximumf %35, %37 : vector<64x128xf32>
    %c0_20 = arith.constant 0 : index
    %c0_21 = arith.constant 0 : index
    %39 = vector.load %arg6[%c0_20, %c0_21] : memref<1x128xf32, #tpu.memory_space<vmem>>, vector<1x128xf32>
    %40 = vector.extract_strided_slice %0 {offsets = [4, 0], sizes = [1, 1], strides = [1, 1]} : vector<5x128xf32> to vector<1x1xf32>
    %41 = vector.broadcast %39 : vector<1x128xf32> to vector<64x128xf32>
    %42 = arith.mulf %38, %41 : vector<64x128xf32>
    %cst_22 = arith.constant dense<0.000000e+00> : vector<64xf32>
    %43 = vector.multi_reduction <add>, %42, %cst_22 [1] : vector<64x128xf32> to vector<64xf32>
    %44 = vector.shape_cast %43 : vector<64xf32> to vector<64x1xf32>
    %45 = vector.broadcast %40 : vector<1x1xf32> to vector<64x1xf32>
    %46 = arith.addf %44, %45 : vector<64x1xf32>
    %c0_23 = arith.constant 0 : index
    %c0_24 = arith.constant 0 : index
    %47 = vector.load %arg8[%c0_23, %c0_24] : memref<128x384xbf16, #tpu.memory_space<vmem>>, vector<128x384xbf16>
    %48 = vector.extract_strided_slice %1 {offsets = [0, 0], sizes = [1, 384], strides = [1, 1]} : vector<3x384xf32> to vector<1x384xf32>
    %49 = arith.truncf %20 : vector<64x128xf32> to vector<64x128xbf16>
    %cst_25 = arith.constant dense<0.000000e+00> : vector<64x384xf32>
    %50 = tpu.matmul %49, %47, %cst_25 {dimension_numbers = #tpu.dot_dimension_numbers<[1], [0], [0], [1], [0, 0, 1, 1], [], []>} : vector<64x128xbf16>, vector<128x384xbf16>, vector<64x384xf32> -> vector<64x384xf32>
    %51 = vector.broadcast %48 : vector<1x384xf32> to vector<64x384xf32>
    %52 = arith.addf %50, %51 : vector<64x384xf32>
    %cst_26 = arith.constant 1.000000e-01 : f32
    %53 = vector.broadcast %cst_26 : f32 to vector<64x384xf32>
    %54 = arith.mulf %53, %52 : vector<64x384xf32>
    %55 = arith.maximumf %52, %54 : vector<64x384xf32>
    %c0_27 = arith.constant 0 : index
    %c0_28 = arith.constant 0 : index
    %56 = vector.load %arg9[%c0_27, %c0_28] : memref<384x384xbf16, #tpu.memory_space<vmem>>, vector<384x384xbf16>
    %57 = vector.extract_strided_slice %1 {offsets = [1, 0], sizes = [1, 384], strides = [1, 1]} : vector<3x384xf32> to vector<1x384xf32>
    %58 = arith.truncf %55 : vector<64x384xf32> to vector<64x384xbf16>
    %cst_29 = arith.constant dense<0.000000e+00> : vector<64x384xf32>
    %59 = tpu.matmul %58, %56, %cst_29 {dimension_numbers = #tpu.dot_dimension_numbers<[1], [0], [0], [1], [0, 0, 1, 1], [], []>} : vector<64x384xbf16>, vector<384x384xbf16>, vector<64x384xf32> -> vector<64x384xf32>
    %60 = vector.broadcast %57 : vector<1x384xf32> to vector<64x384xf32>
    %61 = arith.addf %59, %60 : vector<64x384xf32>
    %cst_30 = arith.constant 1.000000e-01 : f32
    %62 = vector.broadcast %cst_30 : f32 to vector<64x384xf32>
    %63 = arith.mulf %62, %61 : vector<64x384xf32>
    %64 = arith.maximumf %61, %63 : vector<64x384xf32>
    %c0_31 = arith.constant 0 : index
    %c0_32 = arith.constant 0 : index
    %65 = vector.load %arg10[%c0_31, %c0_32] : memref<384x384xbf16, #tpu.memory_space<vmem>>, vector<384x384xbf16>
    %66 = vector.extract_strided_slice %1 {offsets = [2, 0], sizes = [1, 384], strides = [1, 1]} : vector<3x384xf32> to vector<1x384xf32>
    %67 = arith.truncf %64 : vector<64x384xf32> to vector<64x384xbf16>
    %cst_33 = arith.constant dense<0.000000e+00> : vector<64x384xf32>
    %68 = tpu.matmul %67, %65, %cst_33 {dimension_numbers = #tpu.dot_dimension_numbers<[1], [0], [0], [1], [0, 0, 1, 1], [], []>} : vector<64x384xbf16>, vector<384x384xbf16>, vector<64x384xf32> -> vector<64x384xf32>
    %69 = vector.broadcast %66 : vector<1x384xf32> to vector<64x384xf32>
    %70 = arith.addf %68, %69 : vector<64x384xf32>
    %71 = vector.extract_strided_slice %70 {offsets = [0, 0], sizes = [64, 128], strides = [1, 1]} : vector<64x384xf32> to vector<64x128xf32>
    %cst_34 = arith.constant dense<0.000000e+00> : vector<64xf32>
    %72 = vector.multi_reduction <add>, %71, %cst_34 [1] : vector<64x128xf32> to vector<64xf32>
    %73 = vector.shape_cast %72 : vector<64xf32> to vector<64x1xf32>
    %cst_35 = arith.constant 1.250000e-01 : f32
    %74 = vector.broadcast %cst_35 : f32 to vector<64x1xf32>
    %75 = arith.mulf %73, %74 : vector<64x1xf32>
    %76 = vector.broadcast %46 : vector<64x1xf32> to vector<64x128xf32>
    %77 = arith.addf %76, %71 : vector<64x128xf32>
    %78 = vector.broadcast %75 : vector<64x1xf32> to vector<64x128xf32>
    %79 = arith.subf %77, %78 : vector<64x128xf32>
    %c0_36 = arith.constant 0 : index
    %c0_37 = arith.constant 0 : index
    %80 = vector.load %arg12[%c0_36, %c0_37] : memref<64x384xf32, #tpu.memory_space<vmem>>, vector<64x128xf32>
    tpu.vector_store %arg12[%c0_36, %c0_37], %79 {strides = array<i32>} : memref<64x384xf32, #tpu.memory_space<vmem>>, vector<64x128xf32>,
    %81 = vector.extract_strided_slice %70 {offsets = [0, 128], sizes = [64, 128], strides = [1, 1]} : vector<64x384xf32> to vector<64x128xf32>
    %cst_38 = arith.constant dense<0.000000e+00> : vector<64xf32>
    %82 = vector.multi_reduction <add>, %81, %cst_38 [1] : vector<64x128xf32> to vector<64xf32>
    %83 = vector.shape_cast %82 : vector<64xf32> to vector<64x1xf32>
    %cst_39 = arith.constant 0.166666672 : f32
    %84 = vector.broadcast %cst_39 : f32 to vector<64x1xf32>
    %85 = arith.mulf %83, %84 : vector<64x1xf32>
    %86 = vector.broadcast %46 : vector<64x1xf32> to vector<64x128xf32>
    %87 = arith.addf %86, %81 : vector<64x128xf32>
    %88 = vector.broadcast %85 : vector<64x1xf32> to vector<64x128xf32>
    %89 = arith.subf %87, %88 : vector<64x128xf32>
    %c0_40 = arith.constant 0 : index
    %c128 = arith.constant 128 : index
    %90 = vector.load %arg12[%c0_40, %c128] : memref<64x384xf32, #tpu.memory_space<vmem>>, vector<64x128xf32>
    tpu.vector_store %arg12[%c0_40, %c128], %89 {strides = array<i32>} : memref<64x384xf32, #tpu.memory_space<vmem>>, vector<64x128xf32>,
    %91 = vector.extract_strided_slice %70 {offsets = [0, 256], sizes = [64, 128], strides = [1, 1]} : vector<64x384xf32> to vector<64x128xf32>
    %cst_41 = arith.constant dense<0.000000e+00> : vector<64xf32>
    %92 = vector.multi_reduction <add>, %91, %cst_41 [1] : vector<64x128xf32> to vector<64xf32>
    %93 = vector.shape_cast %92 : vector<64xf32> to vector<64x1xf32>
    %cst_42 = arith.constant 2.500000e-01 : f32
    %94 = vector.broadcast %cst_42 : f32 to vector<64x1xf32>
    %95 = arith.mulf %93, %94 : vector<64x1xf32>
    %96 = vector.broadcast %46 : vector<64x1xf32> to vector<64x128xf32>
    %97 = arith.addf %96, %91 : vector<64x128xf32>
    %98 = vector.broadcast %95 : vector<64x1xf32> to vector<64x128xf32>
    %99 = arith.subf %97, %98 : vector<64x128xf32>
    %c0_43 = arith.constant 0 : index
    %c256 = arith.constant 256 : index
    %100 = vector.load %arg12[%c0_43, %c256] : memref<64x384xf32, #tpu.memory_space<vmem>>, vector<64x128xf32>
    tpu.vector_store %arg12[%c0_43, %c256], %99 {strides = array<i32>} : memref<64x384xf32, #tpu.memory_space<vmem>>, vector<64x128xf32>,
    return
  }
  func.func @transform_0(%arg0: i32) -> (i32, i32) {
    %c0_i32 = arith.constant 0 : i32
    %c0_i32_0 = arith.constant 0 : i32
    %c0_i32_1 = arith.constant 0 : i32
    return %c0_i32, %c0_i32_0 : i32, i32
  }
  func.func @transform_1(%arg0: i32) -> (i32, i32) {
    %c0_i32 = arith.constant 0 : i32
    %c0_i32_0 = arith.constant 0 : i32
    %c0_i32_1 = arith.constant 0 : i32
    return %c0_i32, %c0_i32_0 : i32, i32
  }
  func.func @transform_2(%arg0: i32) -> (i32, i32) {
    %c0_i32 = arith.constant 0 : i32
    %c0_i32_0 = arith.constant 0 : i32
    %c0_i32_1 = arith.constant 0 : i32
    return %c0_i32, %c0_i32_0 : i32, i32
  }
  func.func @transform_3(%arg0: i32) -> (i32, i32) {
    %c0_i32 = arith.constant 0 : i32
    %c0_i32_0 = arith.constant 0 : i32
    %c0_i32_1 = arith.constant 0 : i32
    return %c0_i32, %c0_i32_0 : i32, i32
  }
  func.func @transform_4(%arg0: i32) -> (i32, i32) {
    %c0_i32 = arith.constant 0 : i32
    %c0_i32_0 = arith.constant 0 : i32
    %c0_i32_1 = arith.constant 0 : i32
    return %c0_i32, %c0_i32_0 : i32, i32
  }
  func.func @transform_5(%arg0: i32) -> (i32, i32) {
    %c0_i32 = arith.constant 0 : i32
    %c0_i32_0 = arith.constant 0 : i32
    %c0_i32_1 = arith.constant 0 : i32
    return %c0_i32, %c0_i32_0 : i32, i32
  }
  func.func @transform_6(%arg0: i32) -> (i32, i32) {
    %c0_i32 = arith.constant 0 : i32
    %c0_i32_0 = arith.constant 0 : i32
    %c0_i32_1 = arith.constant 0 : i32
    return %c0_i32, %c0_i32_0 : i32, i32
  }
  func.func @transform_7(%arg0: i32) -> (i32, i32) {
    %c0_i32 = arith.constant 0 : i32
    %c0_i32_0 = arith.constant 0 : i32
    %c0_i32_1 = arith.constant 0 : i32
    return %c0_i32, %c0_i32_0 : i32, i32
  }
  func.func @transform_8(%arg0: i32) -> (i32, i32) {
    %c0_i32 = arith.constant 0 : i32
    %c0_i32_0 = arith.constant 0 : i32
    %c0_i32_1 = arith.constant 0 : i32
    return %c0_i32, %c0_i32_0 : i32, i32
  }
  func.func @transform_9(%arg0: i32) -> (i32, i32) {
    %c0_i32 = arith.constant 0 : i32
    %c0_i32_0 = arith.constant 0 : i32
    %c0_i32_1 = arith.constant 0 : i32
    return %c0_i32, %c0_i32_0 : i32, i32
  }
  func.func @transform_10(%arg0: i32) -> (i32, i32) {
    %c0_i32 = arith.constant 0 : i32
    %c0_i32_0 = arith.constant 0 : i32
    %c0_i32_1 = arith.constant 0 : i32
    return %c0_i32, %c0_i32_0 : i32, i32
  }
  func.func @transform_11(%arg0: i32) -> (i32, i32) {
    %c0_i32 = arith.constant 0 : i32
    %c0_i32_0 = arith.constant 0 : i32
    %c0_i32_1 = arith.constant 0 : i32
    return %c0_i32, %c0_i32_0 : i32, i32
  }
}

</mosaic_0001>

<llo_original>
// kernel: tpu_custom_call.1
$region0: #{tpu_custom_call.1}
  #allocation0 [shape = 'u32[]', space=smem, size = 0x4, offset = 0x4, fixed_abs, tag = 'smem constant byte address 0x4 - core index']
  #allocation1 [shape = 'u32[144,128]{1,0:T(1,128)}', space=vmem, size = 0x12000, scoped, tag = 'internal scratch']
  %s0 = inlined_call_operand.vmem [shape: f32[64,32], index: 0, kind: input, shape index: {}]
  %s1 = inlined_call_operand.vmem [shape: bf16[32,128], index: 1, kind: input, shape index: {}]
  %s2 = inlined_call_operand.vmem [shape: bf16[128,128], index: 2, kind: input, shape index: {}]
  %s3 = inlined_call_operand.hbm [shape: bf16[128,128], index: 3, kind: input, shape index: {}]
  %s4 = inlined_call_operand.hbm [shape: bf16[128,128], index: 4, kind: input, shape index: {}]
  %s5 = inlined_call_operand.vmem [shape: f32[1,128], index: 5, kind: input, shape index: {}]
  %s6 = inlined_call_operand.vmem [shape: f32[5,128], index: 6, kind: input, shape index: {}]
  %s7 = inlined_call_operand.hbm [shape: bf16[128,384], index: 7, kind: input, shape index: {}]
  %s8 = inlined_call_operand.hbm [shape: bf16[384,384], index: 8, kind: input, shape index: {}]
  %s9 = inlined_call_operand.hbm [shape: bf16[384,384], index: 9, kind: input, shape index: {}]
  %s10 = inlined_call_operand.vmem [shape: f32[3,384], index: 10, kind: input, shape index: {}]
  %s11 = inlined_call_operand.hbm [shape: f32[64,384], index: 11, kind: output, shape index: {}]
  %s12 = sld [smem:[#allocation0]]
  $region74: #{tpu_custom_call.1} parent=0
    _
  %s14 = ssub.s32 1, %s12
  %s15 = scalar_select 0, %s14, %s12
  $region1: #{tpu_custom_call.1} parent=0
    #allocation2 [shape = 'u8[32768]{0}', space=vmem, size = 0x8000, scoped, tag = 'input window, operand 3, single buffered']
    #allocation3 [shape = 's32[1]{0}', space=sflag, size = 0x4, scoped, tag = 'scoped memory for tpu_custom_call.1']
    #allocation4 [shape = 's32[1]{0}', space=sflag, size = 0x4, scoped, tag = 'scoped memory for tpu_custom_call.1']
    #allocation5 [shape = 'u8[32768]{0}', space=vmem, size = 0x8000, scoped, tag = 'input window, operand 4, single buffered']
    #allocation6 [shape = 's32[1]{0}', space=sflag, size = 0x4, scoped, tag = 'scoped memory for tpu_custom_call.1']
    #allocation7 [shape = 'u8[98304]{0}', space=vmem, size = 0x18000, scoped, tag = 'input window, operand 7, single buffered']
    #allocation8 [shape = 'u8[294912]{0}', space=vmem, size = 0x48000, scoped, tag = 'input window, operand 8, single buffered']
    #allocation9 [shape = 's32[1]{0}', space=sflag, size = 0x4, scoped, tag = 'scoped memory for tpu_custom_call.1']
    #allocation10 [shape = 'u8[294912]{0}', space=vmem, size = 0x48000, scoped, tag = 'input window, operand 9, single buffered']
    #allocation11 [shape = 'u8[98304]{0}', space=vmem, size = 0x18000, scoped, tag = 'output window, operand 0, single buffered']
    %16 = vsyncpa [#allocation3], 0
    %17 = vsyncpa [#allocation6], 0
    %18 = vsyncpa [#allocation9], 0
    %19 = vsyncpa [#allocation4], 0
    // Predicated region
    $region2: #{tpu_custom_call.1} parent=1 // pred_check
      _
    $region3: #{tpu_custom_call.1} parent=1 // pred_check_branch
      %21 = sbr.rel (0) target = $region5
    $region4: #{tpu_custom_call.1} parent=1 // pred_region
      _
    $region5: #{tpu_custom_call.1} parent=1 // pred_fallthru
      _
    // Predicated region
    $region6: #{tpu_custom_call.1} parent=1 // pred_check
      _
    $region7: #{tpu_custom_call.1} parent=1 // pred_check_branch
      %23 = sbr.rel (0) target = $region9
    $region8: #{tpu_custom_call.1} parent=1 // pred_region
      _
    $region9: #{tpu_custom_call.1} parent=1 // pred_fallthru
      _
    // Predicated region
    $region10: #{tpu_custom_call.1} parent=1 // pred_check
      _
    $region11: #{tpu_custom_call.1} parent=1 // pred_check_branch
      %25 = sbr.rel (0) target = $region13
    $region12: #{tpu_custom_call.1} parent=1 // pred_region
      _
    $region13: #{tpu_custom_call.1} parent=1 // pred_fallthru
      _
    // Predicated region
    $region14: #{tpu_custom_call.1} parent=1 // pred_check
      _
    $region15: #{tpu_custom_call.1} parent=1 // pred_check_branch
      %27 = sbr.rel (0) target = $region17
    $region16: #{tpu_custom_call.1} parent=1 // pred_region
      %s29 = ssub.s32 1024, 1024
      %30 = vsyncadd [#allocation3], %s29
      %s31 = sshll.u32 [#allocation2], 4
      %s32 = int_to_ptr.vmem [resolvable:$true] %s31
      %37 = dma.hbm_to_vmem [thread:$0]  %s3, 1024, %s32, [#allocation3], 64, 64, 4
    $region17: #{tpu_custom_call.1} parent=1 // pred_fallthru
      _
    // Predicated region
    $region18: #{tpu_custom_call.1} parent=1 // pred_check
      _
    $region19: #{tpu_custom_call.1} parent=1 // pred_check_branch
      %39 = sbr.rel (0) target = $region21
    $region20: #{tpu_custom_call.1} parent=1 // pred_region
      %s41 = ssub.s32 1024, 1024
      %42 = vsyncadd [#allocation6], %s41
      %s43 = sshll.u32 [#allocation5], 4
      %s44 = int_to_ptr.vmem [resolvable:$true] %s43
      %49 = dma.hbm_to_vmem [thread:$0]  %s4, 1024, %s44, [#allocation6], 64, 64, 4
    $region21: #{tpu_custom_call.1} parent=1 // pred_fallthru
      _
    // Predicated region
    $region22: #{tpu_custom_call.1} parent=1 // pred_check
      _
    $region23: #{tpu_custom_call.1} parent=1 // pred_check_branch
      %51 = sbr.rel (0) target = $region25
    $region24: #{tpu_custom_call.1} parent=1 // pred_region
      _
    $region25: #{tpu_custom_call.1} parent=1 // pred_fallthru
      _
    // Predicated region
    $region26: #{tpu_custom_call.1} parent=1 // pred_check
      _
    $region27: #{tpu_custom_call.1} parent=1 // pred_check_branch
      %53 = sbr.rel (0) target = $region29
    $region28: #{tpu_custom_call.1} parent=1 // pred_region
      _
    $region29: #{tpu_custom_call.1} parent=1 // pred_fallthru
      _
    // Predicated region
    $region30: #{tpu_custom_call.1} parent=1 // pred_check
      _
    $region31: #{tpu_custom_call.1} parent=1 // pred_check_branch
      %55 = sbr.rel (0) target = $region33
    $region32: #{tpu_custom_call.1} parent=1 // pred_region
      %s57 = ssub.s32 3072, 3072
      %58 = vsyncadd [#allocation6], %s57
      %s59 = sshll.u32 [#allocation7], 4
      %s60 = int_to_ptr.vmem [resolvable:$true] %s59
      %65 = dma.hbm_to_vmem [thread:$0]  %s7, 3072, %s60, [#allocation6], 192, 192, 12
    $region33: #{tpu_custom_call.1} parent=1 // pred_fallthru
      _
    // Predicated region
    $region34: #{tpu_custom_call.1} parent=1 // pred_check
      _
    $region35: #{tpu_custom_call.1} parent=1 // pred_check_branch
      %67 = sbr.rel (0) target = $region37
    $region36: #{tpu_custom_call.1} parent=1 // pred_region
      %s69 = ssub.s32 9216, 9216
      %70 = vsyncadd [#allocation9], %s69
      %s71 = sshll.u32 [#allocation8], 4
      %s72 = int_to_ptr.vmem [resolvable:$true] %s71
      %77 = dma.hbm_to_vmem [thread:$0]  %s8, 9216, %s72, [#allocation9], 192, 192, 12
    $region37: #{tpu_custom_call.1} parent=1 // pred_fallthru
      _
    // Predicated region
    $region38: #{tpu_custom_call.1} parent=1 // pred_check
      _
    $region39: #{tpu_custom_call.1} parent=1 // pred_check_branch
      %79 = sbr.rel (0) target = $region41
    $region40: #{tpu_custom_call.1} parent=1 // pred_region
      %s81 = ssub.s32 9216, 9216
      %82 = vsyncadd [#allocation9], %s81
      %s83 = sshll.u32 [#allocation10], 4
      %s84 = int_to_ptr.vmem [resolvable:$true] %s83
      %89 = dma.hbm_to_vmem [thread:$0]  %s9, 9216, %s84, [#allocation9], 192, 192, 12
    $region41: #{tpu_custom_call.1} parent=1 // pred_fallthru
      _
    // Predicated region
    $region42: #{tpu_custom_call.1} parent=1 // pred_check
      _
    $region43: #{tpu_custom_call.1} parent=1 // pred_check_branch
      %91 = sbr.rel (0) target = $region45
    $region44: #{tpu_custom_call.1} parent=1 // pred_region
      _
    $region45: #{tpu_custom_call.1} parent=1 // pred_fallthru
      _
    // Predicated region
    $region46: #{tpu_custom_call.1} parent=1 // pred_check
      _
    $region47: #{tpu_custom_call.1} parent=1 // pred_check_branch
      %93 = sbr.rel (0) target = $region49
    $region48: #{tpu_custom_call.1} parent=1 // pred_region
      %94 = dma.done [#allocation3], 1024
    $region49: #{tpu_custom_call.1} parent=1 // pred_fallthru
      _
    // Predicated region
    $region50: #{tpu_custom_call.1} parent=1 // pred_check
      _
    $region51: #{tpu_custom_call.1} parent=1 // pred_check_branch
      %96 = sbr.rel (0) target = $region53
    $region52: #{tpu_custom_call.1} parent=1 // pred_region
      %97 = dma.done [#allocation6], 1024
    $region53: #{tpu_custom_call.1} parent=1 // pred_fallthru
      _
    // Predicated region
    $region54: #{tpu_custom_call.1} parent=1 // pred_check
      _
    $region55: #{tpu_custom_call.1} parent=1 // pred_check_branch
      %99 = sbr.rel (0) target = $region57
    $region56: #{tpu_custom_call.1} parent=1 // pred_region
      %100 = dma.done [#allocation6], 3072
    $region57: #{tpu_custom_call.1} parent=1 // pred_fallthru
      _
    // Predicated region
    $region58: #{tpu_custom_call.1} parent=1 // pred_check
      _
    $region59: #{tpu_custom_call.1} parent=1 // pred_check_branch
      %102 = sbr.rel (0) target = $region61
    $region60: #{tpu_custom_call.1} parent=1 // pred_region
      %103 = dma.done [#allocation9], 9216
    $region61: #{tpu_custom_call.1} parent=1 // pred_fallthru
      _
    // Predicated region
    $region62: #{tpu_custom_call.1} parent=1 // pred_check
      _
    $region63: #{tpu_custom_call.1} parent=1 // pred_check_branch
      %105 = sbr.rel (0) target = $region65
    $region64: #{tpu_custom_call.1} parent=1 // pred_region
      %106 = dma.done [#allocation9], 9216
    $region65: #{tpu_custom_call.1} parent=1 // pred_fallthru
      _
    %v108 = vld [vmem:[%s6] sm:$0x1f]
    %v109 = vld [vmem:[%s10] sm:$0x77]
    %v110 = vld [vmem:[%s10 + $0x8] sm:$0x7]
    %v111 = vld [vmem:[%s0] sm:$0xff]
    %v112 = vld [vmem:[%s0 + $0x8] sm:$0xff]
    %v113 = vld [vmem:[%s0 + $0x10] sm:$0xff]
    %v114 = vld [vmem:[%s0 + $0x18] sm:$0xff]
    %v115 = vld [vmem:[%s0 + $0x20] sm:$0xff]
    %v116 = vld [vmem:[%s0 + $0x28] sm:$0xff]
    %v117 = vld [vmem:[%s0 + $0x30] sm:$0xff]
    %v118 = vld [vmem:[%s0 + $0x38] sm:$0xff]
    %v119 = vld [vmem:[%s1] sm:$0xf]
    %v120 = vld [vmem:[%s1 + $0x4] sm:$0xf]
    %v121 = vld [vmem:[%s1 + $0x8] sm:$0xf]
    %v122 = vld [vmem:[%s1 + $0xc] sm:$0xf]
    %v123 = vpack.c.bf16 %v112, %v111
    %v124 = vpack.c.bf16 %v114, %v113
    %v125 = vpack.c.bf16 %v116, %v115
    %v126 = vpack.c.bf16 %v118, %v117
    %v127 = vlaneseq
    %v128 = vshrl.u32 %v127, 7
    %v129 = vsub.s32 0, %v128
    %v130 = vrot.slane %v108, %v129
    %v135 = vunpack.c.l.b16 %v119
    %v136 = vunpack.c.l.b16 %v120
    %v137 = vunpack.c.l.b16 %v121
    %v138 = vunpack.c.l.b16 %v122
    %v139 = vpack.c.b16 %v136, %v135
    %v140 = vpack.c.b16 %v138, %v137
    %vm143 = vcmask 261120
    %v145 = vsel %vm143, %v123, 0
    %v148 = vsel %vm143, %v124, 0
    %v151 = vsel %vm143, %v125, 0
    %v154 = vsel %vm143, %v126, 0
    %156 = vmatprep.subr.bf16.mxu0 0
    %157 = vmatpush1.bf16.msra.mxu0 %v139
    %158 = vmatprep.subr.bf16.mxu0 0
    %159 = vmatpush1.bf16.msra.mxu0 %v140
    %160 = vmatprep.subr.bf16.mxu0 0
    %161 = vmatpush1.bf16.msra.mxu0 0
    %162 = vmatprep.subr.bf16.mxu0 0
    %163 = vmatpush1.bf16.msra.mxu0 0
    %164 = vmatprep.subr.bf16.mxu0 0
    %165 = vmatpush1.bf16.msra.mxu0 0
    %166 = vmatprep.subr.bf16.mxu0 0
    %167 = vmatpush1.bf16.msra.mxu0 0
    %168 = vmatprep.subr.bf16.mxu0 0
    %169 = vmatpush1.bf16.msra.mxu0 0
    %170 = vmatprep.subr.bf16.mxu0 0
    %171 = vmatpush1.bf16.msra.mxu0 0
    %172 = vmatprep.subr.bf16.mxu0 0
    %173 = vmatpush1.bf16.msra.mxu0 0
    %174 = vmatprep.subr.bf16.mxu0 0
    %175 = vmatpush1.bf16.msra.mxu0 0
    %176 = vmatprep.subr.bf16.mxu0 0
    %177 = vmatpush1.bf16.msra.mxu0 0
    %178 = vmatprep.subr.bf16.mxu0 0
    %179 = vmatpush1.bf16.msra.mxu0 0
    %180 = vmatprep.subr.bf16.mxu0 0
    %181 = vmatpush1.bf16.msra.mxu0 0
    %182 = vmatprep.subr.bf16.mxu0 0
    %183 = vmatpush1.bf16.msra.mxu0 0
    %184 = vmatprep.subr.bf16.mxu0 0
    %185 = vmatpush1.bf16.msra.mxu0 0
    %186 = vmatprep.subr.bf16.mxu0 0
    %187 = vmatpush1.bf16.msra.mxu0 0
    %188 = vmatprep.mubr.bf16.mxu0 0
    %189 = vmatmul.mubr.bf16.gmra.mrb[0].mxu0 %v145
    %v190 = vpop.f32.mrb[0].mxu0
    %v191 = vadd.f32 %v130, %v190
    %v192 = vpop.f32.mrb[0].mxu0
    %v193 = vpop.f32.mrb[0].mxu0
    %v194 = vadd.f32 %v130, %v193
    %v195 = vpop.f32.mrb[0].mxu0
    %196 = vmatprep.mubr.bf16.mxu0 0
    %197 = vmatmul.mubr.bf16.gmra.mrb[0].mxu0 %v148
    %v198 = vpop.f32.mrb[0].mxu0
    %v199 = vadd.f32 %v130, %v198
    %v200 = vpop.f32.mrb[0].mxu0
    %v201 = vpop.f32.mrb[0].mxu0
    %v202 = vadd.f32 %v130, %v201
    %v203 = vpop.f32.mrb[0].mxu0
    %204 = vmatprep.mubr.bf16.mxu0 0
    %205 = vmatmul.mubr.bf16.gmra.mrb[0].mxu0 %v151
    %v206 = vpop.f32.mrb[0].mxu0
    %v207 = vadd.f32 %v130, %v206
    %v208 = vpop.f32.mrb[0].mxu0
    %v209 = vpop.f32.mrb[0].mxu0
    %v210 = vadd.f32 %v130, %v209
    %v211 = vpop.f32.mrb[0].mxu0
    %212 = vmatprep.mubr.bf16.mxu0 0
    %213 = vmatmul.mubr.bf16.gmra.mrb[0].mxu0 %v154
    %v214 = vpop.f32.mrb[0].mxu0
    %v215 = vadd.f32 %v130, %v214
    %v216 = vpop.f32.mrb[0].mxu0
    %v217 = vpop.f32.mrb[0].mxu0
    %v218 = vadd.f32 %v130, %v217
    %v219 = vpop.f32.mrb[0].mxu0
    %220 = vdwg.mxu0
    %v221 = vmul.f32 %v191, 0.1
    %v222 = vmul.f32 %v194, 0.1
    %v223 = vmul.f32 %v199, 0.1
    %v224 = vmul.f32 %v202, 0.1
    %v225 = vmul.f32 %v207, 0.1
    %v226 = vmul.f32 %v210, 0.1
    %v227 = vmul.f32 %v215, 0.1
    %v228 = vmul.f32 %v218, 0.1
    %v229 = vmax.f32 %v191, %v221
    %v230 = vmax.f32 %v194, %v222
    %v231 = vmax.f32 %v199, %v223
    %v232 = vmax.f32 %v202, %v224
    %v233 = vmax.f32 %v207, %v225
    %v234 = vmax.f32 %v210, %v226
    %v235 = vmax.f32 %v215, %v227
    %v236 = vmax.f32 %v218, %v228
    %v237 = vld [vmem:[%s2] sm:$0xf]
    %v238 = vld [vmem:[%s2 + $0x4] sm:$0xf]
    %v239 = vld [vmem:[%s2 + $0x8] sm:$0xf]
    %v240 = vld [vmem:[%s2 + $0xc] sm:$0xf]
    %v241 = vld [vmem:[%s2 + $0x10] sm:$0xf]
    %v242 = vld [vmem:[%s2 + $0x14] sm:$0xf]
    %v243 = vld [vmem:[%s2 + $0x18] sm:$0xf]
    %v244 = vld [vmem:[%s2 + $0x1c] sm:$0xf]
    %v245 = vld [vmem:[%s2 + $0x20] sm:$0xf]
    %v246 = vld [vmem:[%s2 + $0x24] sm:$0xf]
    %v247 = vld [vmem:[%s2 + $0x28] sm:$0xf]
    %v248 = vld [vmem:[%s2 + $0x2c] sm:$0xf]
    %v249 = vld [vmem:[%s2 + $0x30] sm:$0xf]
    %v250 = vld [vmem:[%s2 + $0x34] sm:$0xf]
    %v251 = vld [vmem:[%s2 + $0x38] sm:$0xf]
    %v252 = vld [vmem:[%s2 + $0x3c] sm:$0xf]
    %v253 = vpack.c.bf16 %v230, %v229
    %v254 = vpack.c.bf16 %v232, %v231
    %v255 = vpack.c.bf16 %v234, %v233
    %v256 = vpack.c.bf16 %v236, %v235
    %v257 = vlaneseq
    %v258 = vshrl.u32 %v257, 7
    %v259 = vsub.s32 1, %v258
    %v260 = vrot.slane %v108, %v259
    %v277 = vunpack.c.l.b16 %v237
    %v278 = vunpack.c.l.b16 %v238
    %v279 = vunpack.c.l.b16 %v239
    %v280 = vunpack.c.l.b16 %v240
    %v281 = vunpack.c.l.b16 %v241
    %v282 = vunpack.c.l.b16 %v242
    %v283 = vunpack.c.l.b16 %v243
    %v284 = vunpack.c.l.b16 %v244
    %v285 = vunpack.c.l.b16 %v245
    %v286 = vunpack.c.l.b16 %v246
    %v287 = vunpack.c.l.b16 %v247
    %v288 = vunpack.c.l.b16 %v248
    %v289 = vunpack.c.l.b16 %v249
    %v290 = vunpack.c.l.b16 %v250
    %v291 = vunpack.c.l.b16 %v251
    %v292 = vunpack.c.l.b16 %v252
    %v293 = vpack.c.b16 %v278, %v277
    %v294 = vpack.c.b16 %v280, %v279
    %v295 = vpack.c.b16 %v282, %v281
    %v296 = vpack.c.b16 %v284, %v283
    %v297 = vpack.c.b16 %v286, %v285
    %v298 = vpack.c.b16 %v288, %v287
    %v299 = vpack.c.b16 %v290, %v289
    %v300 = vpack.c.b16 %v292, %v291
    %309 = vmatprep.subr.bf16.mxu0 0
    %310 = vmatpush1.bf16.msra.mxu0 %v293
    %311 = vmatprep.subr.bf16.mxu0 0
    %312 = vmatpush1.bf16.msra.mxu0 %v294
    %313 = vmatprep.subr.bf16.mxu0 0
    %314 = vmatpush1.bf16.msra.mxu0 %v295
    %315 = vmatprep.subr.bf16.mxu0 0
    %316 = vmatpush1.bf16.msra.mxu0 %v296
    %317 = vmatprep.subr.bf16.mxu0 0
    %318 = vmatpush1.bf16.msra.mxu0 %v297
    %319 = vmatprep.subr.bf16.mxu0 0
    %320 = vmatpush1.bf16.msra.mxu0 %v298
    %321 = vmatprep.subr.bf16.mxu0 0
    %322 = vmatpush1.bf16.msra.mxu0 %v299
    %323 = vmatprep.subr.bf16.mxu0 0
    %324 = vmatpush1.bf16.msra.mxu0 %v300
    %325 = vmatprep.subr.bf16.mxu0 0
    %326 = vmatpush1.bf16.msra.mxu0 0
    %327 = vmatprep.subr.bf16.mxu0 0
    %328 = vmatpush1.bf16.msra.mxu0 0
    %329 = vmatprep.subr.bf16.mxu0 0
    %330 = vmatpush1.bf16.msra.mxu0 0
    %331 = vmatprep.subr.bf16.mxu0 0
    %332 = vmatpush1.bf16.msra.mxu0 0
    %333 = vmatprep.subr.bf16.mxu0 0
    %334 = vmatpush1.bf16.msra.mxu0 0
    %335 = vmatprep.subr.bf16.mxu0 0
    %336 = vmatpush1.bf16.msra.mxu0 0
    %337 = vmatprep.subr.bf16.mxu0 0
    %338 = vmatpush1.bf16.msra.mxu0 0
    %339 = vmatprep.subr.bf16.mxu0 0
    %340 = vmatpush1.bf16.msra.mxu0 0
    %341 = vmatprep.mubr.bf16.mxu0 0
    %342 = vmatmul.mubr.bf16.gmra.mrb[0].mxu0 %v253
    %v343 = vpop.f32.mrb[0].mxu0
    %v344 = vadd.f32 %v260, %v343
    %v345 = vpop.f32.mrb[0].mxu0
    %v346 = vpop.f32.mrb[0].mxu0
    %v347 = vadd.f32 %v260, %v346
    %v348 = vpop.f32.mrb[0].mxu0
    %349 = vmatprep.mubr.bf16.mxu0 0
    %350 = vmatmul.mubr.bf16.gmra.mrb[0].mxu0 %v254
    %v351 = vpop.f32.mrb[0].mxu0
    %v352 = vadd.f32 %v260, %v351
    %v353 = vpop.f32.mrb[0].mxu0
    %v354 = vpop.f32.mrb[0].mxu0
    %v355 = vadd.f32 %v260, %v354
    %v356 = vpop.f32.mrb[0].mxu0
    %357 = vmatprep.mubr.bf16.mxu0 0
    %358 = vmatmul.mubr.bf16.gmra.mrb[0].mxu0 %v255
    %v359 = vpop.f32.mrb[0].mxu0
    %v360 = vadd.f32 %v260, %v359
    %v361 = vpop.f32.mrb[0].mxu0
    %v362 = vpop.f32.mrb[0].mxu0
    %v363 = vadd.f32 %v260, %v362
    %v364 = vpop.f32.mrb[0].mxu0
    %365 = vmatprep.mubr.bf16.mxu0 0
    %366 = vmatmul.mubr.bf16.gmra.mrb[0].mxu0 %v256
    %v367 = vpop.f32.mrb[0].mxu0
    %v368 = vadd.f32 %v260, %v367
    %v369 = vpop.f32.mrb[0].mxu0
    %v370 = vpop.f32.mrb[0].mxu0
    %v371 = vadd.f32 %v260, %v370
    %v372 = vpop.f32.mrb[0].mxu0
    %373 = vdwg.mxu0
    %v374 = vmul.f32 %v344, 0.1
    %v375 = vmul.f32 %v347, 0.1
    %v376 = vmul.f32 %v352, 0.1
    %v377 = vmul.f32 %v355, 0.1
    %v378 = vmul.f32 %v360, 0.1
    %v379 = vmul.f32 %v363, 0.1
    %v380 = vmul.f32 %v368, 0.1
    %v381 = vmul.f32 %v371, 0.1
    %v382 = vmax.f32 %v344, %v374
    %v383 = vmax.f32 %v347, %v375
    %v384 = vmax.f32 %v352, %v376
    %v385 = vmax.f32 %v355, %v377
    %v386 = vmax.f32 %v360, %v378
    %v387 = vmax.f32 %v363, %v379
    %v388 = vmax.f32 %v368, %v380
    %v389 = vmax.f32 %v371, %v381
    %v390 = vld [vmem:[#allocation2] sm:$0xf]
    %v391 = vld [vmem:[#allocation2 + $0x4] sm:$0xf]
    %v392 = vld [vmem:[#allocation2 + $0x8] sm:$0xf]
    %v393 = vld [vmem:[#allocation2 + $0xc] sm:$0xf]
    %v394 = vld [vmem:[#allocation2 + $0x10] sm:$0xf]
    %v395 = vld [vmem:[#allocation2 + $0x14] sm:$0xf]
    %v396 = vld [vmem:[#allocation2 + $0x18] sm:$0xf]
    %v397 = vld [vmem:[#allocation2 + $0x1c] sm:$0xf]
    %v398 = vld [vmem:[#allocation2 + $0x20] sm:$0xf]
    %v399 = vld [vmem:[#allocation2 + $0x24] sm:$0xf]
    %v400 = vld [vmem:[#allocation2 + $0x28] sm:$0xf]
    %v401 = vld [vmem:[#allocation2 + $0x2c] sm:$0xf]
    %v402 = vld [vmem:[#allocation2 + $0x30] sm:$0xf]
    %v403 = vld [vmem:[#allocation2 + $0x34] sm:$0xf]
    %v404 = vld [vmem:[#allocation2 + $0x38] sm:$0xf]
    %v405 = vld [vmem:[#allocation2 + $0x3c] sm:$0xf]
    %v406 = vpack.c.bf16 %v383, %v382
    %v407 = vpack.c.bf16 %v385, %v384
    %v408 = vpack.c.bf16 %v387, %v386
    %v409 = vpack.c.bf16 %v389, %v388
    %v410 = vlaneseq
    %v411 = vshrl.u32 %v410, 7
    %v412 = vsub.s32 2, %v411
    %v413 = vrot.slane %v108, %v412
    %v430 = vunpack.c.l.b16 %v390
    %v431 = vunpack.c.l.b16 %v391
    %v432 = vunpack.c.l.b16 %v392
    %v433 = vunpack.c.l.b16 %v393
    %v434 = vunpack.c.l.b16 %v394
    %v435 = vunpack.c.l.b16 %v395
    %v436 = vunpack.c.l.b16 %v396
    %v437 = vunpack.c.l.b16 %v397
    %v438 = vunpack.c.l.b16 %v398
    %v439 = vunpack.c.l.b16 %v399
    %v440 = vunpack.c.l.b16 %v400
    %v441 = vunpack.c.l.b16 %v401
    %v442 = vunpack.c.l.b16 %v402
    %v443 = vunpack.c.l.b16 %v403
    %v444 = vunpack.c.l.b16 %v404
    %v445 = vunpack.c.l.b16 %v405
    %v446 = vpack.c.b16 %v431, %v430
    %v447 = vpack.c.b16 %v433, %v432
    %v448 = vpack.c.b16 %v435, %v434
    %v449 = vpack.c.b16 %v437, %v436
    %v450 = vpack.c.b16 %v439, %v438
    %v451 = vpack.c.b16 %v441, %v440
    %v452 = vpack.c.b16 %v443, %v442
    %v453 = vpack.c.b16 %v445, %v444
    %462 = vmatprep.subr.bf16.mxu0 0
    %463 = vmatpush1.bf16.msra.mxu0 %v446
    %464 = vmatprep.subr.bf16.mxu0 0
    %465 = vmatpush1.bf16.msra.mxu0 %v447
    %466 = vmatprep.subr.bf16.mxu0 0
    %467 = vmatpush1.bf16.msra.mxu0 %v448
    %468 = vmatprep.subr.bf16.mxu0 0
    %469 = vmatpush1.bf16.msra.mxu0 %v449
    %470 = vmatprep.subr.bf16.mxu0 0
    %471 = vmatpush1.bf16.msra.mxu0 %v450
    %472 = vmatprep.subr.bf16.mxu0 0
    %473 = vmatpush1.bf16.msra.mxu0 %v451
    %474 = vmatprep.subr.bf16.mxu0 0
    %475 = vmatpush1.bf16.msra.mxu0 %v452
    %476 = vmatprep.subr.bf16.mxu0 0
    %477 = vmatpush1.bf16.msra.mxu0 %v453
    %478 = vmatprep.subr.bf16.mxu0 0
    %479 = vmatpush1.bf16.msra.mxu0 0
    %480 = vmatprep.subr.bf16.mxu0 0
    %481 = vmatpush1.bf16.msra.mxu0 0
    %482 = vmatprep.subr.bf16.mxu0 0
    %483 = vmatpush1.bf16.msra.mxu0 0
    %484 = vmatprep.subr.bf16.mxu0 0
    %485 = vmatpush1.bf16.msra.mxu0 0
    %486 = vmatprep.subr.bf16.mxu0 0
    %487 = vmatpush1.bf16.msra.mxu0 0
    %488 = vmatprep.subr.bf16.mxu0 0
    %489 = vmatpush1.bf16.msra.mxu0 0
    %490 = vmatprep.subr.bf16.mxu0 0
    %491 = vmatpush1.bf16.msra.mxu0 0
    %492 = vmatprep.subr.bf16.mxu0 0
    %493 = vmatpush1.bf16.msra.mxu0 0
    %494 = vmatprep.mubr.bf16.mxu0 0
    %495 = vmatmul.mubr.bf16.gmra.mrb[0].mxu0 %v406
    %v496 = vpop.f32.mrb[0].mxu0
    %v497 = vadd.f32 %v413, %v496
    %v498 = vpop.f32.mrb[0].mxu0
    %v499 = vpop.f32.mrb[0].mxu0
    %v500 = vadd.f32 %v413, %v499
    %v501 = vpop.f32.mrb[0].mxu0
    %502 = vmatprep.mubr.bf16.mxu0 0
    %503 = vmatmul.mubr.bf16.gmra.mrb[0].mxu0 %v407
    %v504 = vpop.f32.mrb[0].mxu0
    %v505 = vadd.f32 %v413, %v504
    %v506 = vpop.f32.mrb[0].mxu0
    %v507 = vpop.f32.mrb[0].mxu0
    %v508 = vadd.f32 %v413, %v507
    %v509 = vpop.f32.mrb[0].mxu0
    %510 = vmatprep.mubr.bf16.mxu0 0
    %511 = vmatmul.mubr.bf16.gmra.mrb[0].mxu0 %v408
    %v512 = vpop.f32.mrb[0].mxu0
    %v513 = vadd.f32 %v413, %v512
    %v514 = vpop.f32.mrb[0].mxu0
    %v515 = vpop.f32.mrb[0].mxu0
    %v516 = vadd.f32 %v413, %v515
    %v517 = vpop.f32.mrb[0].mxu0
    %518 = vmatprep.mubr.bf16.mxu0 0
    %519 = vmatmul.mubr.bf16.gmra.mrb[0].mxu0 %v409
    %v520 = vpop.f32.mrb[0].mxu0
    %v521 = vadd.f32 %v413, %v520
    %v522 = vpop.f32.mrb[0].mxu0
    %v523 = vpop.f32.mrb[0].mxu0
    %v524 = vadd.f32 %v413, %v523
    %v525 = vpop.f32.mrb[0].mxu0
    %526 = vdwg.mxu0
    %v527 = vmul.f32 %v497, 0.1
    %v528 = vmul.f32 %v500, 0.1
    %v529 = vmul.f32 %v505, 0.1
    %v530 = vmul.f32 %v508, 0.1
    %v531 = vmul.f32 %v513, 0.1
    %v532 = vmul.f32 %v516, 0.1
    %v533 = vmul.f32 %v521, 0.1
    %v534 = vmul.f32 %v524, 0.1
    %v535 = vmax.f32 %v497, %v527
    %v536 = vmax.f32 %v500, %v528
    %v537 = vmax.f32 %v505, %v529
    %v538 = vmax.f32 %v508, %v530
    %v539 = vmax.f32 %v513, %v531
    %v540 = vmax.f32 %v516, %v532
    %v541 = vmax.f32 %v521, %v533
    %v542 = vmax.f32 %v524, %v534
    %v543 = vld [vmem:[#allocation5] sm:$0xf]
    %v544 = vld [vmem:[#allocation5 + $0x4] sm:$0xf]
    %v545 = vld [vmem:[#allocation5 + $0x8] sm:$0xf]
    %v546 = vld [vmem:[#allocation5 + $0xc] sm:$0xf]
    %v547 = vld [vmem:[#allocation5 + $0x10] sm:$0xf]
    %v548 = vld [vmem:[#allocation5 + $0x14] sm:$0xf]
    %v549 = vld [vmem:[#allocation5 + $0x18] sm:$0xf]
    %v550 = vld [vmem:[#allocation5 + $0x1c] sm:$0xf]
    %v551 = vld [vmem:[#allocation5 + $0x20] sm:$0xf]
    %v552 = vld [vmem:[#allocation5 + $0x24] sm:$0xf]
    %v553 = vld [vmem:[#allocation5 + $0x28] sm:$0xf]
    %v554 = vld [vmem:[#allocation5 + $0x2c] sm:$0xf]
    %v555 = vld [vmem:[#allocation5 + $0x30] sm:$0xf]
    %v556 = vld [vmem:[#allocation5 + $0x34] sm:$0xf]
    %v557 = vld [vmem:[#allocation5 + $0x38] sm:$0xf]
    %v558 = vld [vmem:[#allocation5 + $0x3c] sm:$0xf]
    %v559 = vpack.c.bf16 %v536, %v535
    %v560 = vpack.c.bf16 %v538, %v537
    %v561 = vpack.c.bf16 %v540, %v539
    %v562 = vpack.c.bf16 %v542, %v541
    %v563 = vlaneseq
    %v564 = vshrl.u32 %v563, 7
    %v565 = vsub.s32 3, %v564
    %v566 = vrot.slane %v108, %v565
    %v583 = vunpack.c.l.b16 %v543
    %v584 = vunpack.c.l.b16 %v544
    %v585 = vunpack.c.l.b16 %v545
    %v586 = vunpack.c.l.b16 %v546
    %v587 = vunpack.c.l.b16 %v547
    %v588 = vunpack.c.l.b16 %v548
    %v589 = vunpack.c.l.b16 %v549
    %v590 = vunpack.c.l.b16 %v550
    %v591 = vunpack.c.l.b16 %v551
    %v592 = vunpack.c.l.b16 %v552
    %v593 = vunpack.c.l.b16 %v553
    %v594 = vunpack.c.l.b16 %v554
    %v595 = vunpack.c.l.b16 %v555
    %v596 = vunpack.c.l.b16 %v556
    %v597 = vunpack.c.l.b16 %v557
    %v598 = vunpack.c.l.b16 %v558
    %v599 = vpack.c.b16 %v584, %v583
    %v600 = vpack.c.b16 %v586, %v585
    %v601 = vpack.c.b16 %v588, %v587
    %v602 = vpack.c.b16 %v590, %v589
    %v603 = vpack.c.b16 %v592, %v591
    %v604 = vpack.c.b16 %v594, %v593
    %v605 = vpack.c.b16 %v596, %v595
    %v606 = vpack.c.b16 %v598, %v597
    %615 = vmatprep.subr.bf16.mxu0 0
    %616 = vmatpush1.bf16.msra.mxu0 %v599
    %617 = vmatprep.subr.bf16.mxu0 0
    %618 = vmatpush1.bf16.msra.mxu0 %v600
    %619 = vmatprep.subr.bf16.mxu0 0
    %620 = vmatpush1.bf16.msra.mxu0 %v601
    %621 = vmatprep.subr.bf16.mxu0 0
    %622 = vmatpush1.bf16.msra.mxu0 %v602
    %623 = vmatprep.subr.bf16.mxu0 0
    %624 = vmatpush1.bf16.msra.mxu0 %v603
    %625 = vmatprep.subr.bf16.mxu0 0
    %626 = vmatpush1.bf16.msra.mxu0 %v604
    %627 = vmatprep.subr.bf16.mxu0 0
    %628 = vmatpush1.bf16.msra.mxu0 %v605
    %629 = vmatprep.subr.bf16.mxu0 0
    %630 = vmatpush1.bf16.msra.mxu0 %v606
    %631 = vmatprep.subr.bf16.mxu0 0
    %632 = vmatpush1.bf16.msra.mxu0 0
    %633 = vmatprep.subr.bf16.mxu0 0
    %634 = vmatpush1.bf16.msra.mxu0 0
    %635 = vmatprep.subr.bf16.mxu0 0
    %636 = vmatpush1.bf16.msra.mxu0 0
    %637 = vmatprep.subr.bf16.mxu0 0
    %638 = vmatpush1.bf16.msra.mxu0 0
    %639 = vmatprep.subr.bf16.mxu0 0
    %640 = vmatpush1.bf16.msra.mxu0 0
    %641 = vmatprep.subr.bf16.mxu0 0
    %642 = vmatpush1.bf16.msra.mxu0 0
    %643 = vmatprep.subr.bf16.mxu0 0
    %644 = vmatpush1.bf16.msra.mxu0 0
    %645 = vmatprep.subr.bf16.mxu0 0
    %646 = vmatpush1.bf16.msra.mxu0 0
    %647 = vmatprep.mubr.bf16.mxu0 0
    %648 = vmatmul.mubr.bf16.gmra.mrb[0].mxu0 %v559
    %v649 = vpop.f32.mrb[0].mxu0
    %v650 = vadd.f32 %v566, %v649
    %v651 = vpop.f32.mrb[0].mxu0
    %v652 = vpop.f32.mrb[0].mxu0
    %v653 = vadd.f32 %v566, %v652
    %v654 = vpop.f32.mrb[0].mxu0
    %655 = vmatprep.mubr.bf16.mxu0 0
    %656 = vmatmul.mubr.bf16.gmra.mrb[0].mxu0 %v560
    %v657 = vpop.f32.mrb[0].mxu0
    %v658 = vadd.f32 %v566, %v657
    %v659 = vpop.f32.mrb[0].mxu0
    %v660 = vpop.f32.mrb[0].mxu0
    %v661 = vadd.f32 %v566, %v660
    %v662 = vpop.f32.mrb[0].mxu0
    %663 = vmatprep.mubr.bf16.mxu0 0
    %664 = vmatmul.mubr.bf16.gmra.mrb[0].mxu0 %v561
    %v665 = vpop.f32.mrb[0].mxu0
    %v666 = vadd.f32 %v566, %v665
    %v667 = vpop.f32.mrb[0].mxu0
    %v668 = vpop.f32.mrb[0].mxu0
    %v669 = vadd.f32 %v566, %v668
    %v670 = vpop.f32.mrb[0].mxu0
    %671 = vmatprep.mubr.bf16.mxu0 0
    %672 = vmatmul.mubr.bf16.gmra.mrb[0].mxu0 %v562
    %v673 = vpop.f32.mrb[0].mxu0
    %v674 = vadd.f32 %v566, %v673
    %v675 = vpop.f32.mrb[0].mxu0
    %v676 = vpop.f32.mrb[0].mxu0
    %v677 = vadd.f32 %v566, %v676
    %v678 = vpop.f32.mrb[0].mxu0
    %679 = vdwg.mxu0
    %v680 = vmul.f32 %v650, 0.1
    %v681 = vmul.f32 %v653, 0.1
    %v682 = vmul.f32 %v658, 0.1
    %v683 = vmul.f32 %v661, 0.1
    %v684 = vmul.f32 %v666, 0.1
    %v685 = vmul.f32 %v669, 0.1
    %v686 = vmul.f32 %v674, 0.1
    %v687 = vmul.f32 %v677, 0.1
    %v688 = vmax.f32 %v650, %v680
    %v689 = vmax.f32 %v653, %v681
    %v690 = vmax.f32 %v658, %v682
    %v691 = vmax.f32 %v661, %v683
    %v692 = vmax.f32 %v666, %v684
    %v693 = vmax.f32 %v669, %v685
    %v694 = vmax.f32 %v674, %v686
    %v695 = vmax.f32 %v677, %v687
    %v696 = vld [vmem:[%s5] sm:$0x1]
    %v698 = vlaneseq
    %v699 = vshrl.u32 %v698, 7
    %v700 = vsub.s32 0, %v699
    %v701 = vrot.slane %v696, %v700
    %v703 = vmul.f32 %v688, %v701
    %v704 = vmul.f32 %v689, %v701
    %v705 = vmul.f32 %v690, %v701
    %v706 = vmul.f32 %v691, %v701
    %v707 = vmul.f32 %v692, %v701
    %v708 = vmul.f32 %v693, %v701
    %v709 = vmul.f32 %v694, %v701
    %v710 = vmul.f32 %v695, %v701
    %711 = vadd.xlane.f32.xlu0 %v703
    %v712 = vpop.xlane.xlu0 %711
    %713 = vadd.xlane.f32.xlu0 %v704
    %v714 = vpop.xlane.xlu0 %713
    %715 = vadd.xlane.f32.xlu0 %v705
    %v716 = vpop.xlane.xlu0 %715
    %717 = vadd.xlane.f32.xlu0 %v706
    %v718 = vpop.xlane.xlu0 %717
    %719 = vadd.xlane.f32.xlu0 %v707
    %v720 = vpop.xlane.xlu0 %719
    %721 = vadd.xlane.f32.xlu0 %v708
    %v722 = vpop.xlane.xlu0 %721
    %723 = vadd.xlane.f32.xlu0 %v709
    %v724 = vpop.xlane.xlu0 %723
    %725 = vadd.xlane.f32.xlu0 %v710
    %v726 = vpop.xlane.xlu0 %725
    %v727 = vlaneseq
    %v728 = vshrl.u32 %v727, 7
    %v729 = vsub.s32 4, %v728
    %v730 = vrot.slane %v108, %v729
    %v731 = vadd.f32 %v712, %v730
    %v732 = vadd.f32 %v714, %v730
    %v733 = vadd.f32 %v716, %v730
    %v734 = vadd.f32 %v718, %v730
    %v735 = vadd.f32 %v720, %v730
    %v736 = vadd.f32 %v722, %v730
    %v737 = vadd.f32 %v724, %v730
    %v738 = vadd.f32 %v726, %v730
    %v739 = vld [vmem:[#allocation7] sm:$0xff]
    %v740 = vld [vmem:[#allocation7 + $0x8] sm:$0xf]
    %v741 = vld [vmem:[#allocation7 + $0xc] sm:$0xff]
    %v742 = vld [vmem:[#allocation7 + $0x14] sm:$0xf]
    %v743 = vld [vmem:[#allocation7 + $0x18] sm:$0xff]
    %v744 = vld [vmem:[#allocation7 + $0x20] sm:$0xf]
    %v745 = vld [vmem:[#allocation7 + $0x24] sm:$0xff]
    %v746 = vld [vmem:[#allocation7 + $0x2c] sm:$0xf]
    %v747 = vld [vmem:[#allocation7 + $0x30] sm:$0xff]
    %v748 = vld [vmem:[#allocation7 + $0x38] sm:$0xf]
    %v749 = vld [vmem:[#allocation7 + $0x3c] sm:$0xff]
    %v750 = vld [vmem:[#allocation7 + $0x44] sm:$0xf]
    %v751 = vld [vmem:[#allocation7 + $0x48] sm:$0xff]
    %v752 = vld [vmem:[#allocation7 + $0x50] sm:$0xf]
    %v753 = vld [vmem:[#allocation7 + $0x54] sm:$0xff]
    %v754 = vld [vmem:[#allocation7 + $0x5c] sm:$0xf]
    %v755 = vld [vmem:[#allocation7 + $0x60] sm:$0xff]
    %v756 = vld [vmem:[#allocation7 + $0x68] sm:$0xf]
    %v757 = vld [vmem:[#allocation7 + $0x6c] sm:$0xff]
    %v758 = vld [vmem:[#allocation7 + $0x74] sm:$0xf]
    %v759 = vld [vmem:[#allocation7 + $0x78] sm:$0xff]
    %v760 = vld [vmem:[#allocation7 + $0x80] sm:$0xf]
    %v761 = vld [vmem:[#allocation7 + $0x84] sm:$0xff]
    %v762 = vld [vmem:[#allocation7 + $0x8c] sm:$0xf]
    %v763 = vld [vmem:[#allocation7 + $0x90] sm:$0xff]
    %v764 = vld [vmem:[#allocation7 + $0x98] sm:$0xf]
    %v765 = vld [vmem:[#allocation7 + $0x9c] sm:$0xff]
    %v766 = vld [vmem:[#allocation7 + $0xa4] sm:$0xf]
    %v767 = vld [vmem:[#allocation7 + $0xa8] sm:$0xff]
    %v768 = vld [vmem:[#allocation7 + $0xb0] sm:$0xf]
    %v769 = vld [vmem:[#allocation7 + $0xb4] sm:$0xff]
    %v770 = vld [vmem:[#allocation7 + $0xbc] sm:$0xf]
    %v773 = vlaneseq
    %v774 = vshrl.u32 %v773, 7
    %v775 = vsub.s32 0, %v774
    %v776 = vrot.slane %v109, %v775
    %v777 = vlaneseq
    %v778 = vshrl.u32 %v777, 7
    %v779 = vsub.s32 4, %v778
    %v780 = vrot.slane %v109, %v779
    %v781 = vlaneseq
    %v782 = vshrl.u32 %v781, 7
    %v783 = vsub.s32 0, %v782
    %v784 = vrot.slane %v110, %v783
    %v788 = vlaneseq
    %v789 = vshrl.u32 %v788, 7
    %v790 = vsub.s32 0, %v789
    %v791 = vrot.slane %v776, %v790
    %v792 = vlaneseq
    %v793 = vshrl.u32 %v792, 7
    %v794 = vsub.s32 0, %v793
    %v795 = vrot.slane %v780, %v794
    %v796 = vlaneseq
    %v797 = vshrl.u32 %v796, 7
    %v798 = vsub.s32 0, %v797
    %v799 = vrot.slane %v784, %v798
    %v832 = vunpack.c.l.b16 %v739
    %v833 = vunpack.c.h.b16 %v739
    %v834 = vunpack.c.l.b16 %v740
    %v835 = vunpack.c.l.b16 %v741
    %v836 = vunpack.c.h.b16 %v741
    %v837 = vunpack.c.l.b16 %v742
    %v838 = vunpack.c.l.b16 %v743
    %v839 = vunpack.c.h.b16 %v743
    %v840 = vunpack.c.l.b16 %v744
    %v841 = vunpack.c.l.b16 %v745
    %v842 = vunpack.c.h.b16 %v745
    %v843 = vunpack.c.l.b16 %v746
    %v844 = vunpack.c.l.b16 %v747
    %v845 = vunpack.c.h.b16 %v747
    %v846 = vunpack.c.l.b16 %v748
    %v847 = vunpack.c.l.b16 %v749
    %v848 = vunpack.c.h.b16 %v749
    %v849 = vunpack.c.l.b16 %v750
    %v850 = vunpack.c.l.b16 %v751
    %v851 = vunpack.c.h.b16 %v751
    %v852 = vunpack.c.l.b16 %v752
    %v853 = vunpack.c.l.b16 %v753
    %v854 = vunpack.c.h.b16 %v753
    %v855 = vunpack.c.l.b16 %v754
    %v856 = vunpack.c.l.b16 %v755
    %v857 = vunpack.c.h.b16 %v755
    %v858 = vunpack.c.l.b16 %v756
    %v859 = vunpack.c.l.b16 %v757
    %v860 = vunpack.c.h.b16 %v757
    %v861 = vunpack.c.l.b16 %v758
    %v862 = vunpack.c.l.b16 %v759
    %v863 = vunpack.c.h.b16 %v759
    %v864 = vunpack.c.l.b16 %v760
    %v865 = vunpack.c.l.b16 %v761
    %v866 = vunpack.c.h.b16 %v761
    %v867 = vunpack.c.l.b16 %v762
    %v868 = vunpack.c.l.b16 %v763
    %v869 = vunpack.c.h.b16 %v763
    %v870 = vunpack.c.l.b16 %v764
    %v871 = vunpack.c.l.b16 %v765
    %v872 = vunpack.c.h.b16 %v765
    %v873 = vunpack.c.l.b16 %v766
    %v874 = vunpack.c.l.b16 %v767
    %v875 = vunpack.c.h.b16 %v767
    %v876 = vunpack.c.l.b16 %v768
    %v877 = vunpack.c.l.b16 %v769
    %v878 = vunpack.c.h.b16 %v769
    %v879 = vunpack.c.l.b16 %v770
    %v880 = vpack.c.b16 %v835, %v832
    %v881 = vpack.c.b16 %v836, %v833
    %v882 = vpack.c.b16 %v837, %v834
    %v883 = vpack.c.b16 %v841, %v838
    %v884 = vpack.c.b16 %v842, %v839
    %v885 = vpack.c.b16 %v843, %v840
    %v886 = vpack.c.b16 %v847, %v844
    %v887 = vpack.c.b16 %v848, %v845
    %v888 = vpack.c.b16 %v849, %v846
    %v889 = vpack.c.b16 %v853, %v850
    %v890 = vpack.c.b16 %v854, %v851
    %v891 = vpack.c.b16 %v855, %v852
    %v892 = vpack.c.b16 %v859, %v856
    %v893 = vpack.c.b16 %v860, %v857
    %v894 = vpack.c.b16 %v861, %v858
    %v895 = vpack.c.b16 %v865, %v862
    %v896 = vpack.c.b16 %v866, %v863
    %v897 = vpack.c.b16 %v867, %v864
    %v898 = vpack.c.b16 %v871, %v868
    %v899 = vpack.c.b16 %v872, %v869
    %v900 = vpack.c.b16 %v873, %v870
    %v901 = vpack.c.b16 %v877, %v874
    %v902 = vpack.c.b16 %v878, %v875
    %v903 = vpack.c.b16 %v879, %v876
    %928 = vmatprep.subr.bf16.mxu0 %v881
    %929 = vmatpush1.bf16.msra.mxu0 %v880
    %930 = vmatprep.subr.bf16.mxu0 %v884
    %931 = vmatpush1.bf16.msra.mxu0 %v883
    %932 = vmatprep.subr.bf16.mxu0 %v887
    %933 = vmatpush1.bf16.msra.mxu0 %v886
    %934 = vmatprep.subr.bf16.mxu0 %v890
    %935 = vmatpush1.bf16.msra.mxu0 %v889
    %936 = vmatprep.subr.bf16.mxu0 %v893
    %937 = vmatpush1.bf16.msra.mxu0 %v892
    %938 = vmatprep.subr.bf16.mxu0 %v896
    %939 = vmatpush1.bf16.msra.mxu0 %v895
    %940 = vmatprep.subr.bf16.mxu0 %v899
    %941 = vmatpush1.bf16.msra.mxu0 %v898
    %942 = vmatprep.subr.bf16.mxu0 %v902
    %943 = vmatpush1.bf16.msra.mxu0 %v901
    %944 = vmatprep.subr.bf16.mxu0 0
    %945 = vmatpush1.bf16.msra.mxu0 0
    %946 = vmatprep.subr.bf16.mxu0 0
    %947 = vmatpush1.bf16.msra.mxu0 0
    %948 = vmatprep.subr.bf16.mxu0 0
    %949 = vmatpush1.bf16.msra.mxu0 0
    %950 = vmatprep.subr.bf16.mxu0 0
    %951 = vmatpush1.bf16.msra.mxu0 0
    %952 = vmatprep.subr.bf16.mxu0 0
    %953 = vmatpush1.bf16.msra.mxu0 0
    %954 = vmatprep.subr.bf16.mxu0 0
    %955 = vmatpush1.bf16.msra.mxu0 0
    %956 = vmatprep.subr.bf16.mxu0 0
    %957 = vmatpush1.bf16.msra.mxu0 0
    %958 = vmatprep.subr.bf16.mxu0 0
    %959 = vmatpush1.bf16.msra.mxu0 0
    %960 = vmatprep.mubr.bf16.mxu0 0
    %961 = vmatmul.mubr.bf16.gmra.mrb[0].mxu0 %v406
    %v962 = vpop.f32.mrb[0].mxu0
    %v963 = vadd.f32 %v791, %v962
    %v964 = vpop.f32.mrb[0].mxu0
    %v965 = vadd.f32 %v795, %v964
    %v966 = vpop.f32.mrb[0].mxu0
    %v967 = vadd.f32 %v791, %v966
    %v968 = vpop.f32.mrb[0].mxu0
    %v969 = vadd.f32 %v795, %v968
    %970 = vmatprep.mubr.bf16.mxu0 0
    %971 = vmatmul.mubr.bf16.gmra.mrb[0].mxu0 %v407
    %v972 = vpop.f32.mrb[0].mxu0
    %v973 = vadd.f32 %v791, %v972
    %v974 = vpop.f32.mrb[0].mxu0
    %v975 = vadd.f32 %v795, %v974
    %v976 = vpop.f32.mrb[0].mxu0
    %v977 = vadd.f32 %v791, %v976
    %v978 = vpop.f32.mrb[0].mxu0
    %v979 = vadd.f32 %v795, %v978
    %980 = vmatprep.mubr.bf16.mxu0 0
    %981 = vmatmul.mubr.bf16.gmra.mrb[0].mxu0 %v408
    %v982 = vpop.f32.mrb[0].mxu0
    %v983 = vadd.f32 %v791, %v982
    %v984 = vpop.f32.mrb[0].mxu0
    %v985 = vadd.f32 %v795, %v984
    %v986 = vpop.f32.mrb[0].mxu0
    %v987 = vadd.f32 %v791, %v986
    %v988 = vpop.f32.mrb[0].mxu0
    %v989 = vadd.f32 %v795, %v988
    %990 = vmatprep.mubr.bf16.mxu0 0
    %991 = vmatmul.mubr.bf16.gmra.mrb[0].mxu0 %v409
    %v992 = vpop.f32.mrb[0].mxu0
    %v993 = vadd.f32 %v791, %v992
    %v994 = vpop.f32.mrb[0].mxu0
    %v995 = vadd.f32 %v795, %v994
    %v996 = vpop.f32.mrb[0].mxu0
    %v997 = vadd.f32 %v791, %v996
    %v998 = vpop.f32.mrb[0].mxu0
    %v999 = vadd.f32 %v795, %v998
    %1000 = vdwg.mxu0
    %1001 = vmatprep.subr.bf16.mxu0 0
    %1002 = vmatpush1.bf16.msra.mxu0 %v882
    %1003 = vmatprep.subr.bf16.mxu0 0
    %1004 = vmatpush1.bf16.msra.mxu0 %v885
    %1005 = vmatprep.subr.bf16.mxu0 0
    %1006 = vmatpush1.bf16.msra.mxu0 %v888
    %1007 = vmatprep.subr.bf16.mxu0 0
    %1008 = vmatpush1.bf16.msra.mxu0 %v891
    %1009 = vmatprep.subr.bf16.mxu0 0
    %1010 = vmatpush1.bf16.msra.mxu0 %v894
    %1011 = vmatprep.subr.bf16.mxu0 0
    %1012 = vmatpush1.bf16.msra.mxu0 %v897
    %1013 = vmatprep.subr.bf16.mxu0 0
    %1014 = vmatpush1.bf16.msra.mxu0 %v900
    %1015 = vmatprep.subr.bf16.mxu0 0
    %1016 = vmatpush1.bf16.msra.mxu0 %v903
    %1017 = vmatprep.subr.bf16.mxu0 0
    %1018 = vmatpush1.bf16.msra.mxu0 0
    %1019 = vmatprep.subr.bf16.mxu0 0
    %1020 = vmatpush1.bf16.msra.mxu0 0
    %1021 = vmatprep.subr.bf16.mxu0 0
    %1022 = vmatpush1.bf16.msra.mxu0 0
    %1023 = vmatprep.subr.bf16.mxu0 0
    %1024 = vmatpush1.bf16.msra.mxu0 0
    %1025 = vmatprep.subr.bf16.mxu0 0
    %1026 = vmatpush1.bf16.msra.mxu0 0
    %1027 = vmatprep.subr.bf16.mxu0 0
    %1028 = vmatpush1.bf16.msra.mxu0 0
    %1029 = vmatprep.subr.bf16.mxu0 0
    %1030 = vmatpush1.bf16.msra.mxu0 0
    %1031 = vmatprep.subr.bf16.mxu0 0
    %1032 = vmatpush1.bf16.msra.mxu0 0
    %1033 = vmatprep.mubr.bf16.mxu0 0
    %1034 = vmatmul.mubr.bf16.gmra.mrb[0].mxu0 %v406
    %v1035 = vpop.f32.mrb[0].mxu0
    %v1036 = vadd.f32 %v799, %v1035
    %v1037 = vpop.f32.mrb[0].mxu0
    %v1038 = vpop.f32.mrb[0].mxu0
    %v1039 = vadd.f32 %v799, %v1038
    %v1040 = vpop.f32.mrb[0].mxu0
    %1041 = vmatprep.mubr.bf16.mxu0 0
    %1042 = vmatmul.mubr.bf16.gmra.mrb[0].mxu0 %v407
    %v1043 = vpop.f32.mrb[0].mxu0
    %v1044 = vadd.f32 %v799, %v1043
    %v1045 = vpop.f32.mrb[0].mxu0
    %v1046 = vpop.f32.mrb[0].mxu0
    %v1047 = vadd.f32 %v799, %v1046
    %v1048 = vpop.f32.mrb[0].mxu0
    %1049 = vmatprep.mubr.bf16.mxu0 0
    %1050 = vmatmul.mubr.bf16.gmra.mrb[0].mxu0 %v408
    %v1051 = vpop.f32.mrb[0].mxu0
    %v1052 = vadd.f32 %v799, %v1051
    %v1053 = vpop.f32.mrb[0].mxu0
    %v1054 = vpop.f32.mrb[0].mxu0
    %v1055 = vadd.f32 %v799, %v1054
    %v1056 = vpop.f32.mrb[0].mxu0
    %1057 = vmatprep.mubr.bf16.mxu0 0
    %1058 = vmatmul.mubr.bf16.gmra.mrb[0].mxu0 %v409
    %v1059 = vpop.f32.mrb[0].mxu0
    %v1060 = vadd.f32 %v799, %v1059
    %v1061 = vpop.f32.mrb[0].mxu0
    %v1062 = vpop.f32.mrb[0].mxu0
    %v1063 = vadd.f32 %v799, %v1062
    %v1064 = vpop.f32.mrb[0].mxu0
    %1065 = vdwg.mxu0
    %v1066 = vmul.f32 %v963, 0.1
    %v1067 = vmul.f32 %v965, 0.1
    %v1068 = vmul.f32 %v1036, 0.1
    %v1069 = vmul.f32 %v967, 0.1
    %v1070 = vmul.f32 %v969, 0.1
    %v1071 = vmul.f32 %v1039, 0.1
    %v1072 = vmul.f32 %v973, 0.1
    %v1073 = vmul.f32 %v975, 0.1
    %v1074 = vmul.f32 %v1044, 0.1
    %v1075 = vmul.f32 %v977, 0.1
    %v1076 = vmul.f32 %v979, 0.1
    %v1077 = vmul.f32 %v1047, 0.1
    %v1078 = vmul.f32 %v983, 0.1
    %v1079 = vmul.f32 %v985, 0.1
    %v1080 = vmul.f32 %v1052, 0.1
    %v1081 = vmul.f32 %v987, 0.1
    %v1082 = vmul.f32 %v989, 0.1
    %v1083 = vmul.f32 %v1055, 0.1
    %v1084 = vmul.f32 %v993, 0.1
    %v1085 = vmul.f32 %v995, 0.1
    %v1086 = vmul.f32 %v1060, 0.1
    %v1087 = vmul.f32 %v997, 0.1
    %v1088 = vmul.f32 %v999, 0.1
    %v1089 = vmul.f32 %v1063, 0.1
    %v1090 = vmax.f32 %v963, %v1066
    %v1091 = vmax.f32 %v965, %v1067
    %v1092 = vmax.f32 %v1036, %v1068
    %v1093 = vmax.f32 %v967, %v1069
    %v1094 = vmax.f32 %v969, %v1070
    %v1095 = vmax.f32 %v1039, %v1071
    %v1096 = vmax.f32 %v973, %v1072
    %v1097 = vmax.f32 %v975, %v1073
    %v1098 = vmax.f32 %v1044, %v1074
    %v1099 = vmax.f32 %v977, %v1075
    %v1100 = vmax.f32 %v979, %v1076
    %v1101 = vmax.f32 %v1047, %v1077
    %v1102 = vmax.f32 %v983, %v1078
    %v1103 = vmax.f32 %v985, %v1079
    %v1104 = vmax.f32 %v1052, %v1080
    %v1105 = vmax.f32 %v987, %v1081
    %v1106 = vmax.f32 %v989, %v1082
    %v1107 = vmax.f32 %v1055, %v1083
    %v1108 = vmax.f32 %v993, %v1084
    %v1109 = vmax.f32 %v995, %v1085
    %v1110 = vmax.f32 %v1060, %v1086
    %v1111 = vmax.f32 %v997, %v1087
    %v1112 = vmax.f32 %v999, %v1088
    %v1113 = vmax.f32 %v1063, %v1089
    %v1114 = vld [vmem:[#allocation8] sm:$0xff]
    %v1115 = vld [vmem:[#allocation8 + $0x8] sm:$0xf]
    %v1116 = vld [vmem:[#allocation8 + $0xc] sm:$0xff]
    %v1117 = vld [vmem:[#allocation8 + $0x14] sm:$0xf]
    %v1118 = vld [vmem:[#allocation8 + $0x18] sm:$0xff]
    %v1119 = vld [vmem:[#allocation8 + $0x20] sm:$0xf]
    %v1120 = vld [vmem:[#allocation8 + $0x24] sm:$0xff]
    %v1121 = vld [vmem:[#allocation8 + $0x2c] sm:$0xf]
    %v1122 = vld [vmem:[#allocation8 + $0x30] sm:$0xff]
    %v1123 = vld [vmem:[#allocation8 + $0x38] sm:$0xf]
    %v1124 = vld [vmem:[#allocation8 + $0x3c] sm:$0xff]
    %v1125 = vld [vmem:[#allocation8 + $0x44] sm:$0xf]
    %v1126 = vld [vmem:[#allocation8 + $0x48] sm:$0xff]
    %v1127 = vld [vmem:[#allocation8 + $0x50] sm:$0xf]
    %v1128 = vld [vmem:[#allocation8 + $0x54] sm:$0xff]
    %v1129 = vld [vmem:[#allocation8 + $0x5c] sm:$0xf]
    %v1130 = vld [vmem:[#allocation8 + $0x60] sm:$0xff]
    %v1131 = vld [vmem:[#allocation8 + $0x68] sm:$0xf]
    %v1132 = vld [vmem:[#allocation8 + $0x6c] sm:$0xff]
    %v1133 = vld [vmem:[#allocation8 + $0x74] sm:$0xf]
    %v1134 = vld [vmem:[#allocation8 + $0x78] sm:$0xff]
    %v1135 = vld [vmem:[#allocation8 + $0x80] sm:$0xf]
    %v1136 = vld [vmem:[#allocation8 + $0x84] sm:$0xff]
    %v1137 = vld [vmem:[#allocation8 + $0x8c] sm:$0xf]
    %v1138 = vld [vmem:[#allocation8 + $0x90] sm:$0xff]
    %v1139 = vld [vmem:[#allocation8 + $0x98] sm:$0xf]
    %v1140 = vld [vmem:[#allocation8 + $0x9c] sm:$0xff]
    %v1141 = vld [vmem:[#allocation8 + $0xa4] sm:$0xf]
    %v1142 = vld [vmem:[#allocation8 + $0xa8] sm:$0xff]
    %v1143 = vld [vmem:[#allocation8 + $0xb0] sm:$0xf]
    %v1144 = vld [vmem:[#allocation8 + $0xb4] sm:$0xff]
    %v1145 = vld [vmem:[#allocation8 + $0xbc] sm:$0xf]
    %v1146 = vld [vmem:[#allocation8 + $0xc0] sm:$0xff]
    %v1147 = vld [vmem:[#allocation8 + $0xc8] sm:$0xf]
    %v1148 = vld [vmem:[#allocation8 + $0xcc] sm:$0xff]
    %v1149 = vld [vmem:[#allocation8 + $0xd4] sm:$0xf]
    %v1150 = vld [vmem:[#allocation8 + $0xd8] sm:$0xff]
    %v1151 = vld [vmem:[#allocation8 + $0xe0] sm:$0xf]
    %v1152 = vld [vmem:[#allocation8 + $0xe4] sm:$0xff]
    %v1153 = vld [vmem:[#allocation8 + $0xec] sm:$0xf]
    %v1154 = vld [vmem:[#allocation8 + $0xf0] sm:$0xff]
    %v1155 = vld [vmem:[#allocation8 + $0xf8] sm:$0xf]
    %v1156 = vld [vmem:[#allocation8 + $0xfc] sm:$0xff]
    %v1157 = vld [vmem:[#allocation8 + $0x104] sm:$0xf]
    %v1158 = vld [vmem:[#allocation8 + $0x108] sm:$0xff]
    %v1159 = vld [vmem:[#allocation8 + $0x110] sm:$0xf]
    %v1160 = vld [vmem:[#allocation8 + $0x114] sm:$0xff]
    %v1161 = vld [vmem:[#allocation8 + $0x11c] sm:$0xf]
    %v1162 = vld [vmem:[#allocation8 + $0x120] sm:$0xff]
    %v1163 = vld [vmem:[#allocation8 + $0x128] sm:$0xf]
    %v1164 = vld [vmem:[#allocation8 + $0x12c] sm:$0xff]
    %v1165 = vld [vmem:[#allocation8 + $0x134] sm:$0xf]
    %v1166 = vld [vmem:[#allocation8 + $0x138] sm:$0xff]
    %v1167 = vld [vmem:[#allocation8 + $0x140] sm:$0xf]
    %v1168 = vld [vmem:[#allocation8 + $0x144] sm:$0xff]
    %v1169 = vld [vmem:[#allocation8 + $0x14c] sm:$0xf]
    %v1170 = vld [vmem:[#allocation8 + $0x150] sm:$0xff]
    %v1171 = vld [vmem:[#allocation8 + $0x158] sm:$0xf]
    %v1172 = vld [vmem:[#allocation8 + $0x15c] sm:$0xff]
    %v1173 = vld [vmem:[#allocation8 + $0x164] sm:$0xf]
    %v1174 = vld [vmem:[#allocation8 + $0x168] sm:$0xff]
    %v1175 = vld [vmem:[#allocation8 + $0x170] sm:$0xf]
    %v1176 = vld [vmem:[#allocation8 + $0x174] sm:$0xff]
    %v1177 = vld [vmem:[#allocation8 + $0x17c] sm:$0xf]
    %v1178 = vld [vmem:[#allocation8 + $0x180] sm:$0xff]
    %v1179 = vld [vmem:[#allocation8 + $0x188] sm:$0xf]
    %v1180 = vld [vmem:[#allocation8 + $0x18c] sm:$0xff]
    %v1181 = vld [vmem:[#allocation8 + $0x194] sm:$0xf]
    %v1182 = vld [vmem:[#allocation8 + $0x198] sm:$0xff]
    %v1183 = vld [vmem:[#allocation8 + $0x1a0] sm:$0xf]
    %v1184 = vld [vmem:[#allocation8 + $0x1a4] sm:$0xff]
    %v1185 = vld [vmem:[#allocation8 + $0x1ac] sm:$0xf]
    %v1186 = vld [vmem:[#allocation8 + $0x1b0] sm:$0xff]
    %v1187 = vld [vmem:[#allocation8 + $0x1b8] sm:$0xf]
    %v1188 = vld [vmem:[#allocation8 + $0x1bc] sm:$0xff]
    %v1189 = vld [vmem:[#allocation8 + $0x1c4] sm:$0xf]
    %v1190 = vld [vmem:[#allocation8 + $0x1c8] sm:$0xff]
    %v1191 = vld [vmem:[#allocation8 + $0x1d0] sm:$0xf]
    %v1192 = vld [vmem:[#allocation8 + $0x1d4] sm:$0xff]
    %v1193 = vld [vmem:[#allocation8 + $0x1dc] sm:$0xf]
    %v1194 = vld [vmem:[#allocation8 + $0x1e0] sm:$0xff]
    %v1195 = vld [vmem:[#allocation8 + $0x1e8] sm:$0xf]
    %v1196 = vld [vmem:[#allocation8 + $0x1ec] sm:$0xff]
    %v1197 = vld [vmem:[#allocation8 + $0x1f4] sm:$0xf]
    %v1198 = vld [vmem:[#allocation8 + $0x1f8] sm:$0xff]
    %v1199 = vld [vmem:[#allocation8 + $0x200] sm:$0xf]
    %v1200 = vld [vmem:[#allocation8 + $0x204] sm:$0xff]
    %v1201 = vld [vmem:[#allocation8 + $0x20c] sm:$0xf]
    %v1202 = vld [vmem:[#allocation8 + $0x210] sm:$0xff]
    %v1203 = vld [vmem:[#allocation8 + $0x218] sm:$0xf]
    %v1204 = vld [vmem:[#allocation8 + $0x21c] sm:$0xff]
    %v1205 = vld [vmem:[#allocation8 + $0x224] sm:$0xf]
    %v1206 = vld [vmem:[#allocation8 + $0x228] sm:$0xff]
    %v1207 = vld [vmem:[#allocation8 + $0x230] sm:$0xf]
    %v1208 = vld [vmem:[#allocation8 + $0x234] sm:$0xff]
    %v1209 = vld [vmem:[#allocation8 + $0x23c] sm:$0xf]
    %v1210 = vpack.c.bf16 %v1093, %v1090
    %v1211 = vpack.c.bf16 %v1094, %v1091
    %v1212 = vpack.c.bf16 %v1095, %v1092
    %v1213 = vpack.c.bf16 %v1099, %v1096
    %v1214 = vpack.c.bf16 %v1100, %v1097
    %v1215 = vpack.c.bf16 %v1101, %v1098
    %v1216 = vpack.c.bf16 %v1105, %v1102
    %v1217 = vpack.c.bf16 %v1106, %v1103
    %v1218 = vpack.c.bf16 %v1107, %v1104
    %v1219 = vpack.c.bf16 %v1111, %v1108
    %v1220 = vpack.c.bf16 %v1112, %v1109
    %v1221 = vpack.c.bf16 %v1113, %v1110
    %v1222 = vlaneseq
    %v1223 = vshrl.u32 %v1222, 7
    %v1224 = vsub.s32 1, %v1223
    %v1225 = vrot.slane %v109, %v1224
    %v1226 = vlaneseq
    %v1227 = vshrl.u32 %v1226, 7
    %v1228 = vsub.s32 5, %v1227
    %v1229 = vrot.slane %v109, %v1228
    %v1230 = vlaneseq
    %v1231 = vshrl.u32 %v1230, 7
    %v1232 = vsub.s32 1, %v1231
    %v1233 = vrot.slane %v110, %v1232
    %v1237 = vlaneseq
    %v1238 = vshrl.u32 %v1237, 7
    %v1239 = vsub.s32 1, %v1238
    %v1240 = vrot.slane %v1225, %v1239
    %v1241 = vlaneseq
    %v1242 = vshrl.u32 %v1241, 7
    %v1243 = vsub.s32 1, %v1242
    %v1244 = vrot.slane %v1229, %v1243
    %v1245 = vlaneseq
    %v1246 = vshrl.u32 %v1245, 7
    %v1247 = vsub.s32 1, %v1246
    %v1248 = vrot.slane %v1233, %v1247
    %v1345 = vunpack.c.l.b16 %v1114
    %v1346 = vunpack.c.h.b16 %v1114
    %v1347 = vunpack.c.l.b16 %v1115
    %v1348 = vunpack.c.l.b16 %v1116
    %v1349 = vunpack.c.h.b16 %v1116
    %v1350 = vunpack.c.l.b16 %v1117
    %v1351 = vunpack.c.l.b16 %v1118
    %v1352 = vunpack.c.h.b16 %v1118
    %v1353 = vunpack.c.l.b16 %v1119
    %v1354 = vunpack.c.l.b16 %v1120
    %v1355 = vunpack.c.h.b16 %v1120
    %v1356 = vunpack.c.l.b16 %v1121
    %v1357 = vunpack.c.l.b16 %v1122
    %v1358 = vunpack.c.h.b16 %v1122
    %v1359 = vunpack.c.l.b16 %v1123
    %v1360 = vunpack.c.l.b16 %v1124
    %v1361 = vunpack.c.h.b16 %v1124
    %v1362 = vunpack.c.l.b16 %v1125
    %v1363 = vunpack.c.l.b16 %v1126
    %v1364 = vunpack.c.h.b16 %v1126
    %v1365 = vunpack.c.l.b16 %v1127
    %v1366 = vunpack.c.l.b16 %v1128
    %v1367 = vunpack.c.h.b16 %v1128
    %v1368 = vunpack.c.l.b16 %v1129
    %v1369 = vunpack.c.l.b16 %v1130
    %v1370 = vunpack.c.h.b16 %v1130
    %v1371 = vunpack.c.l.b16 %v1131
    %v1372 = vunpack.c.l.b16 %v1132
    %v1373 = vunpack.c.h.b16 %v1132
    %v1374 = vunpack.c.l.b16 %v1133
    %v1375 = vunpack.c.l.b16 %v1134
    %v1376 = vunpack.c.h.b16 %v1134
    %v1377 = vunpack.c.l.b16 %v1135
    %v1378 = vunpack.c.l.b16 %v1136
    %v1379 = vunpack.c.h.b16 %v1136
    %v1380 = vunpack.c.l.b16 %v1137
    %v1381 = vunpack.c.l.b16 %v1138
    %v1382 = vunpack.c.h.b16 %v1138
    %v1383 = vunpack.c.l.b16 %v1139
    %v1384 = vunpack.c.l.b16 %v1140
    %v1385 = vunpack.c.h.b16 %v1140
    %v1386 = vunpack.c.l.b16 %v1141
    %v1387 = vunpack.c.l.b16 %v1142
    %v1388 = vunpack.c.h.b16 %v1142
    %v1389 = vunpack.c.l.b16 %v1143
    %v1390 = vunpack.c.l.b16 %v1144
    %v1391 = vunpack.c.h.b16 %v1144
    %v1392 = vunpack.c.l.b16 %v1145
    %v1393 = vunpack.c.l.b16 %v1146
    %v1394 = vunpack.c.h.b16 %v1146
    %v1395 = vunpack.c.l.b16 %v1147
    %v1396 = vunpack.c.l.b16 %v1148
    %v1397 = vunpack.c.h.b16 %v1148
    %v1398 = vunpack.c.l.b16 %v1149
    %v1399 = vunpack.c.l.b16 %v1150
    %v1400 = vunpack.c.h.b16 %v1150
    %v1401 = vunpack.c.l.b16 %v1151
    %v1402 = vunpack.c.l.b16 %v1152
    %v1403 = vunpack.c.h.b16 %v1152
    %v1404 = vunpack.c.l.b16 %v1153
    %v1405 = vunpack.c.l.b16 %v1154
    %v1406 = vunpack.c.h.b16 %v1154
    %v1407 = vunpack.c.l.b16 %v1155
    %v1408 = vunpack.c.l.b16 %v1156
    %v1409 = vunpack.c.h.b16 %v1156
    %v1410 = vunpack.c.l.b16 %v1157
    %v1411 = vunpack.c.l.b16 %v1158
    %v1412 = vunpack.c.h.b16 %v1158
    %v1413 = vunpack.c.l.b16 %v1159
    %v1414 = vunpack.c.l.b16 %v1160
    %v1415 = vunpack.c.h.b16 %v1160
    %v1416 = vunpack.c.l.b16 %v1161
    %v1417 = vunpack.c.l.b16 %v1162
    %v1418 = vunpack.c.h.b16 %v1162
    %v1419 = vunpack.c.l.b16 %v1163
    %v1420 = vunpack.c.l.b16 %v1164
    %v1421 = vunpack.c.h.b16 %v1164
    %v1422 = vunpack.c.l.b16 %v1165
    %v1423 = vunpack.c.l.b16 %v1166
    %v1424 = vunpack.c.h.b16 %v1166
    %v1425 = vunpack.c.l.b16 %v1167
    %v1426 = vunpack.c.l.b16 %v1168
    %v1427 = vunpack.c.h.b16 %v1168
    %v1428 = vunpack.c.l.b16 %v1169
    %v1429 = vunpack.c.l.b16 %v1170
    %v1430 = vunpack.c.h.b16 %v1170
    %v1431 = vunpack.c.l.b16 %v1171
    %v1432 = vunpack.c.l.b16 %v1172
    %v1433 = vunpack.c.h.b16 %v1172
    %v1434 = vunpack.c.l.b16 %v1173
    %v1435 = vunpack.c.l.b16 %v1174
    %v1436 = vunpack.c.h.b16 %v1174
    %v1437 = vunpack.c.l.b16 %v1175
    %v1438 = vunpack.c.l.b16 %v1176
    %v1439 = vunpack.c.h.b16 %v1176
    %v1440 = vunpack.c.l.b16 %v1177
    %v1441 = vunpack.c.l.b16 %v1178
    %v1442 = vunpack.c.h.b16 %v1178
    %v1443 = vunpack.c.l.b16 %v1179
    %v1444 = vunpack.c.l.b16 %v1180
    %v1445 = vunpack.c.h.b16 %v1180
    %v1446 = vunpack.c.l.b16 %v1181
    %v1447 = vunpack.c.l.b16 %v1182
    %v1448 = vunpack.c.h.b16 %v1182
    %v1449 = vunpack.c.l.b16 %v1183
    %v1450 = vunpack.c.l.b16 %v1184
    %v1451 = vunpack.c.h.b16 %v1184
    %v1452 = vunpack.c.l.b16 %v1185
    %v1453 = vunpack.c.l.b16 %v1186
    %v1454 = vunpack.c.h.b16 %v1186
    %v1455 = vunpack.c.l.b16 %v1187
    %v1456 = vunpack.c.l.b16 %v1188
    %v1457 = vunpack.c.h.b16 %v1188
    %v1458 = vunpack.c.l.b16 %v1189
    %v1459 = vunpack.c.l.b16 %v1190
    %v1460 = vunpack.c.h.b16 %v1190
    %v1461 = vunpack.c.l.b16 %v1191
    %v1462 = vunpack.c.l.b16 %v1192
    %v1463 = vunpack.c.h.b16 %v1192
    %v1464 = vunpack.c.l.b16 %v1193
    %v1465 = vunpack.c.l.b16 %v1194
    %v1466 = vunpack.c.h.b16 %v1194
    %v1467 = vunpack.c.l.b16 %v1195
    %v1468 = vunpack.c.l.b16 %v1196
    %v1469 = vunpack.c.h.b16 %v1196
    %v1470 = vunpack.c.l.b16 %v1197
    %v1471 = vunpack.c.l.b16 %v1198
    %v1472 = vunpack.c.h.b16 %v1198
    %v1473 = vunpack.c.l.b16 %v1199
    %v1474 = vunpack.c.l.b16 %v1200
    %v1475 = vunpack.c.h.b16 %v1200
    %v1476 = vunpack.c.l.b16 %v1201
    %v1477 = vunpack.c.l.b16 %v1202
    %v1478 = vunpack.c.h.b16 %v1202
    %v1479 = vunpack.c.l.b16 %v1203
    %v1480 = vunpack.c.l.b16 %v1204
    %v1481 = vunpack.c.h.b16 %v1204
    %v1482 = vunpack.c.l.b16 %v1205
    %v1483 = vunpack.c.l.b16 %v1206
    %v1484 = vunpack.c.h.b16 %v1206
    %v1485 = vunpack.c.l.b16 %v1207
    %v1486 = vunpack.c.l.b16 %v1208
    %v1487 = vunpack.c.h.b16 %v1208
    %v1488 = vunpack.c.l.b16 %v1209
    %v1489 = vpack.c.b16 %v1348, %v1345
    %v1490 = vpack.c.b16 %v1349, %v1346
    %v1491 = vpack.c.b16 %v1350, %v1347
    %v1492 = vpack.c.b16 %v1354, %v1351
    %v1493 = vpack.c.b16 %v1355, %v1352
    %v1494 = vpack.c.b16 %v1356, %v1353
    %v1495 = vpack.c.b16 %v1360, %v1357
    %v1496 = vpack.c.b16 %v1361, %v1358
    %v1497 = vpack.c.b16 %v1362, %v1359
    %v1498 = vpack.c.b16 %v1366, %v1363
    %v1499 = vpack.c.b16 %v1367, %v1364
    %v1500 = vpack.c.b16 %v1368, %v1365
    %v1501 = vpack.c.b16 %v1372, %v1369
    %v1502 = vpack.c.b16 %v1373, %v1370
    %v1503 = vpack.c.b16 %v1374, %v1371
    %v1504 = vpack.c.b16 %v1378, %v1375
    %v1505 = vpack.c.b16 %v1379, %v1376
    %v1506 = vpack.c.b16 %v1380, %v1377
    %v1507 = vpack.c.b16 %v1384, %v1381
    %v1508 = vpack.c.b16 %v1385, %v1382
    %v1509 = vpack.c.b16 %v1386, %v1383
    %v1510 = vpack.c.b16 %v1390, %v1387
    %v1511 = vpack.c.b16 %v1391, %v1388
    %v1512 = vpack.c.b16 %v1392, %v1389
    %v1513 = vpack.c.b16 %v1396, %v1393
    %v1514 = vpack.c.b16 %v1397, %v1394
    %v1515 = vpack.c.b16 %v1398, %v1395
    %v1516 = vpack.c.b16 %v1402, %v1399
    %v1517 = vpack.c.b16 %v1403, %v1400
    %v1518 = vpack.c.b16 %v1404, %v1401
    %v1519 = vpack.c.b16 %v1408, %v1405
    %v1520 = vpack.c.b16 %v1409, %v1406
    %v1521 = vpack.c.b16 %v1410, %v1407
    %v1522 = vpack.c.b16 %v1414, %v1411
    %v1523 = vpack.c.b16 %v1415, %v1412
    %v1524 = vpack.c.b16 %v1416, %v1413
    %v1525 = vpack.c.b16 %v1420, %v1417
    %v1526 = vpack.c.b16 %v1421, %v1418
    %v1527 = vpack.c.b16 %v1422, %v1419
    %v1528 = vpack.c.b16 %v1426, %v1423
    %v1529 = vpack.c.b16 %v1427, %v1424
    %v1530 = vpack.c.b16 %v1428, %v1425
    %v1531 = vpack.c.b16 %v1432, %v1429
    %v1532 = vpack.c.b16 %v1433, %v1430
    %v1533 = vpack.c.b16 %v1434, %v1431
    %v1534 = vpack.c.b16 %v1438, %v1435
    %v1535 = vpack.c.b16 %v1439, %v1436
    %v1536 = vpack.c.b16 %v1440, %v1437
    %v1537 = vpack.c.b16 %v1444, %v1441
    %v1538 = vpack.c.b16 %v1445, %v1442
    %v1539 = vpack.c.b16 %v1446, %v1443
    %v1540 = vpack.c.b16 %v1450, %v1447
    %v1541 = vpack.c.b16 %v1451, %v1448
    %v1542 = vpack.c.b16 %v1452, %v1449
    %v1543 = vpack.c.b16 %v1456, %v1453
    %v1544 = vpack.c.b16 %v1457, %v1454
    %v1545 = vpack.c.b16 %v1458, %v1455
    %v1546 = vpack.c.b16 %v1462, %v1459
    %v1547 = vpack.c.b16 %v1463, %v1460
    %v1548 = vpack.c.b16 %v1464, %v1461
    %v1549 = vpack.c.b16 %v1468, %v1465
    %v1550 = vpack.c.b16 %v1469, %v1466
    %v1551 = vpack.c.b16 %v1470, %v1467
    %v1552 = vpack.c.b16 %v1474, %v1471
    %v1553 = vpack.c.b16 %v1475, %v1472
    %v1554 = vpack.c.b16 %v1476, %v1473
    %v1555 = vpack.c.b16 %v1480, %v1477
    %v1556 = vpack.c.b16 %v1481, %v1478
    %v1557 = vpack.c.b16 %v1482, %v1479
    %v1558 = vpack.c.b16 %v1486, %v1483
    %v1559 = vpack.c.b16 %v1487, %v1484
    %v1560 = vpack.c.b16 %v1488, %v1485
    %1633 = vmatprep.subr.bf16.mxu0 %v1490
    %1634 = vmatpush1.bf16.msra.mxu0 %v1489
    %1635 = vmatprep.subr.bf16.mxu0 %v1493
    %1636 = vmatpush1.bf16.msra.mxu0 %v1492
    %1637 = vmatprep.subr.bf16.mxu0 %v1496
    %1638 = vmatpush1.bf16.msra.mxu0 %v1495
    %1639 = vmatprep.subr.bf16.mxu0 %v1499
    %1640 = vmatpush1.bf16.msra.mxu0 %v1498
    %1641 = vmatprep.subr.bf16.mxu0 %v1502
    %1642 = vmatpush1.bf16.msra.mxu0 %v1501
    %1643 = vmatprep.subr.bf16.mxu0 %v1505
    %1644 = vmatpush1.bf16.msra.mxu0 %v1504
    %1645 = vmatprep.subr.bf16.mxu0 %v1508
    %1646 = vmatpush1.bf16.msra.mxu0 %v1507
    %1647 = vmatprep.subr.bf16.mxu0 %v1511
    %1648 = vmatpush1.bf16.msra.mxu0 %v1510
    %1649 = vmatprep.subr.bf16.mxu0 %v1514
    %1650 = vmatpush1.bf16.msra.mxu0 %v1513
    %1651 = vmatprep.subr.bf16.mxu0 %v1517
    %1652 = vmatpush1.bf16.msra.mxu0 %v1516
    %1653 = vmatprep.subr.bf16.mxu0 %v1520
    %1654 = vmatpush1.bf16.msra.mxu0 %v1519
    %1655 = vmatprep.subr.bf16.mxu0 %v1523
    %1656 = vmatpush1.bf16.msra.mxu0 %v1522
    %1657 = vmatprep.subr.bf16.mxu0 %v1526
    %1658 = vmatpush1.bf16.msra.mxu0 %v1525
    %1659 = vmatprep.subr.bf16.mxu0 %v1529
    %1660 = vmatpush1.bf16.msra.mxu0 %v1528
    %1661 = vmatprep.subr.bf16.mxu0 %v1532
    %1662 = vmatpush1.bf16.msra.mxu0 %v1531
    %1663 = vmatprep.subr.bf16.mxu0 %v1535
    %1664 = vmatpush1.bf16.msra.mxu0 %v1534
    %1665 = vmatprep.mubr.bf16.mxu0 %v1211
    %1666 = vmatmul.mubr.bf16.gmra.mrb[0].mxu0 %v1210
    %v1667 = vpop.f32.mrb[0].mxu0
    %v1668 = vadd.f32 %v1240, %v1667
    %v1669 = vpop.f32.mrb[0].mxu0
    %v1670 = vadd.f32 %v1244, %v1669
    %v1671 = vpop.f32.mrb[0].mxu0
    %v1672 = vadd.f32 %v1240, %v1671
    %v1673 = vpop.f32.mrb[0].mxu0
    %v1674 = vadd.f32 %v1244, %v1673
    %1675 = vmatprep.mubr.bf16.mxu0 %v1214
    %1676 = vmatmul.mubr.bf16.gmra.mrb[0].mxu0 %v1213
    %v1677 = vpop.f32.mrb[0].mxu0
    %v1678 = vadd.f32 %v1240, %v1677
    %v1679 = vpop.f32.mrb[0].mxu0
    %v1680 = vadd.f32 %v1244, %v1679
    %v1681 = vpop.f32.mrb[0].mxu0
    %v1682 = vadd.f32 %v1240, %v1681
    %v1683 = vpop.f32.mrb[0].mxu0
    %v1684 = vadd.f32 %v1244, %v1683
    %1685 = vmatprep.mubr.bf16.mxu0 %v1217
    %1686 = vmatmul.mubr.bf16.gmra.mrb[0].mxu0 %v1216
    %v1687 = vpop.f32.mrb[0].mxu0
    %v1688 = vadd.f32 %v1240, %v1687
    %v1689 = vpop.f32.mrb[0].mxu0
    %v1690 = vadd.f32 %v1244, %v1689
    %v1691 = vpop.f32.mrb[0].mxu0
    %v1692 = vadd.f32 %v1240, %v1691
    %v1693 = vpop.f32.mrb[0].mxu0
    %v1694 = vadd.f32 %v1244, %v1693
    %1695 = vmatprep.mubr.bf16.mxu0 %v1220
    %1696 = vmatmul.mubr.bf16.gmra.mrb[0].mxu0 %v1219
    %v1697 = vpop.f32.mrb[0].mxu0
    %v1698 = vadd.f32 %v1240, %v1697
    %v1699 = vpop.f32.mrb[0].mxu0
    %v1700 = vadd.f32 %v1244, %v1699
    %v1701 = vpop.f32.mrb[0].mxu0
    %v1702 = vadd.f32 %v1240, %v1701
    %v1703 = vpop.f32.mrb[0].mxu0
    %v1704 = vadd.f32 %v1244, %v1703
    %1705 = vdwg.mxu0
    %1706 = vmatprep.subr.bf16.mxu0 %v1538
    %1707 = vmatpush1.bf16.msra.mxu0 %v1537
    %1708 = vmatprep.subr.bf16.mxu0 %v1541
    %1709 = vmatpush1.bf16.msra.mxu0 %v1540
    %1710 = vmatprep.subr.bf16.mxu0 %v1544
    %1711 = vmatpush1.bf16.msra.mxu0 %v1543
    %1712 = vmatprep.subr.bf16.mxu0 %v1547
    %1713 = vmatpush1.bf16.msra.mxu0 %v1546
    %1714 = vmatprep.subr.bf16.mxu0 %v1550
    %1715 = vmatpush1.bf16.msra.mxu0 %v1549
    %1716 = vmatprep.subr.bf16.mxu0 %v1553
    %1717 = vmatpush1.bf16.msra.mxu0 %v1552
    %1718 = vmatprep.subr.bf16.mxu0 %v1556
    %1719 = vmatpush1.bf16.msra.mxu0 %v1555
    %1720 = vmatprep.subr.bf16.mxu0 %v1559
    %1721 = vmatpush1.bf16.msra.mxu0 %v1558
    %1722 = vmatprep.subr.bf16.mxu0 0
    %1723 = vmatpush1.bf16.msra.mxu0 0
    %1724 = vmatprep.subr.bf16.mxu0 0
    %1725 = vmatpush1.bf16.msra.mxu0 0
    %1726 = vmatprep.subr.bf16.mxu0 0
    %1727 = vmatpush1.bf16.msra.mxu0 0
    %1728 = vmatprep.subr.bf16.mxu0 0
    %1729 = vmatpush1.bf16.msra.mxu0 0
    %1730 = vmatprep.subr.bf16.mxu0 0
    %1731 = vmatpush1.bf16.msra.mxu0 0
    %1732 = vmatprep.subr.bf16.mxu0 0
    %1733 = vmatpush1.bf16.msra.mxu0 0
    %1734 = vmatprep.subr.bf16.mxu0 0
    %1735 = vmatpush1.bf16.msra.mxu0 0
    %1736 = vmatprep.subr.bf16.mxu0 0
    %1737 = vmatpush1.bf16.msra.mxu0 0
    %1738 = vmatprep.mubr.bf16.mxu0 0
    %1739 = vmatmul.mubr.bf16.gmra.mrb[0].mxu0 %v1212
    %v1740 = vpop.f32.mrb[0].mxu0
    %v1741 = vadd.f32 %v1668, %v1740
    %v1742 = vpop.f32.mrb[0].mxu0
    %v1743 = vadd.f32 %v1670, %v1742
    %v1744 = vpop.f32.mrb[0].mxu0
    %v1745 = vadd.f32 %v1672, %v1744
    %v1746 = vpop.f32.mrb[0].mxu0
    %v1747 = vadd.f32 %v1674, %v1746
    %1748 = vmatprep.mubr.bf16.mxu0 0
    %1749 = vmatmul.mubr.bf16.gmra.mrb[0].mxu0 %v1215
    %v1750 = vpop.f32.mrb[0].mxu0
    %v1751 = vadd.f32 %v1678, %v1750
    %v1752 = vpop.f32.mrb[0].mxu0
    %v1753 = vadd.f32 %v1680, %v1752
    %v1754 = vpop.f32.mrb[0].mxu0
    %v1755 = vadd.f32 %v1682, %v1754
    %v1756 = vpop.f32.mrb[0].mxu0
    %v1757 = vadd.f32 %v1684, %v1756
    %1758 = vmatprep.mubr.bf16.mxu0 0
    %1759 = vmatmul.mubr.bf16.gmra.mrb[0].mxu0 %v1218
    %v1760 = vpop.f32.mrb[0].mxu0
    %v1761 = vadd.f32 %v1688, %v1760
    %v1762 = vpop.f32.mrb[0].mxu0
    %v1763 = vadd.f32 %v1690, %v1762
    %v1764 = vpop.f32.mrb[0].mxu0
    %v1765 = vadd.f32 %v1692, %v1764
    %v1766 = vpop.f32.mrb[0].mxu0
    %v1767 = vadd.f32 %v1694, %v1766
    %1768 = vmatprep.mubr.bf16.mxu0 0
    %1769 = vmatmul.mubr.bf16.gmra.mrb[0].mxu0 %v1221
    %v1770 = vpop.f32.mrb[0].mxu0
    %v1771 = vadd.f32 %v1698, %v1770
    %v1772 = vpop.f32.mrb[0].mxu0
    %v1773 = vadd.f32 %v1700, %v1772
    %v1774 = vpop.f32.mrb[0].mxu0
    %v1775 = vadd.f32 %v1702, %v1774
    %v1776 = vpop.f32.mrb[0].mxu0
    %v1777 = vadd.f32 %v1704, %v1776
    %1778 = vdwg.mxu0
    %1779 = vmatprep.subr.bf16.mxu0 0
    %1780 = vmatpush1.bf16.msra.mxu0 %v1491
    %1781 = vmatprep.subr.bf16.mxu0 0
    %1782 = vmatpush1.bf16.msra.mxu0 %v1494
    %1783 = vmatprep.subr.bf16.mxu0 0
    %1784 = vmatpush1.bf16.msra.mxu0 %v1497
    %1785 = vmatprep.subr.bf16.mxu0 0
    %1786 = vmatpush1.bf16.msra.mxu0 %v1500
    %1787 = vmatprep.subr.bf16.mxu0 0
    %1788 = vmatpush1.bf16.msra.mxu0 %v1503
    %1789 = vmatprep.subr.bf16.mxu0 0
    %1790 = vmatpush1.bf16.msra.mxu0 %v1506
    %1791 = vmatprep.subr.bf16.mxu0 0
    %1792 = vmatpush1.bf16.msra.mxu0 %v1509
    %1793 = vmatprep.subr.bf16.mxu0 0
    %1794 = vmatpush1.bf16.msra.mxu0 %v1512
    %1795 = vmatprep.subr.bf16.mxu0 0
    %1796 = vmatpush1.bf16.msra.mxu0 %v1515
    %1797 = vmatprep.subr.bf16.mxu0 0
    %1798 = vmatpush1.bf16.msra.mxu0 %v1518
    %1799 = vmatprep.subr.bf16.mxu0 0
    %1800 = vmatpush1.bf16.msra.mxu0 %v1521
    %1801 = vmatprep.subr.bf16.mxu0 0
    %1802 = vmatpush1.bf16.msra.mxu0 %v1524
    %1803 = vmatprep.subr.bf16.mxu0 0
    %1804 = vmatpush1.bf16.msra.mxu0 %v1527
    %1805 = vmatprep.subr.bf16.mxu0 0
    %1806 = vmatpush1.bf16.msra.mxu0 %v1530
    %1807 = vmatprep.subr.bf16.mxu0 0
    %1808 = vmatpush1.bf16.msra.mxu0 %v1533
    %1809 = vmatprep.subr.bf16.mxu0 0
    %1810 = vmatpush1.bf16.msra.mxu0 %v1536
    %1811 = vmatprep.mubr.bf16.mxu0 %v1211
    %1812 = vmatmul.mubr.bf16.gmra.mrb[0].mxu0 %v1210
    %v1813 = vpop.f32.mrb[0].mxu0
    %v1814 = vadd.f32 %v1248, %v1813
    %v1815 = vpop.f32.mrb[0].mxu0
    %v1816 = vpop.f32.mrb[0].mxu0
    %v1817 = vadd.f32 %v1248, %v1816
    %v1818 = vpop.f32.mrb[0].mxu0
    %1819 = vmatprep.mubr.bf16.mxu0 %v1214
    %1820 = vmatmul.mubr.bf16.gmra.mrb[0].mxu0 %v1213
    %v1821 = vpop.f32.mrb[0].mxu0
    %v1822 = vadd.f32 %v1248, %v1821
    %v1823 = vpop.f32.mrb[0].mxu0
    %v1824 = vpop.f32.mrb[0].mxu0
    %v1825 = vadd.f32 %v1248, %v1824
    %v1826 = vpop.f32.mrb[0].mxu0
    %1827 = vmatprep.mubr.bf16.mxu0 %v1217
    %1828 = vmatmul.mubr.bf16.gmra.mrb[0].mxu0 %v1216
    %v1829 = vpop.f32.mrb[0].mxu0
    %v1830 = vadd.f32 %v1248, %v1829
    %v1831 = vpop.f32.mrb[0].mxu0
    %v1832 = vpop.f32.mrb[0].mxu0
    %v1833 = vadd.f32 %v1248, %v1832
    %v1834 = vpop.f32.mrb[0].mxu0
    %1835 = vmatprep.mubr.bf16.mxu0 %v1220
    %1836 = vmatmul.mubr.bf16.gmra.mrb[0].mxu0 %v1219
    %v1837 = vpop.f32.mrb[0].mxu0
    %v1838 = vadd.f32 %v1248, %v1837
    %v1839 = vpop.f32.mrb[0].mxu0
    %v1840 = vpop.f32.mrb[0].mxu0
    %v1841 = vadd.f32 %v1248, %v1840
    %v1842 = vpop.f32.mrb[0].mxu0
    %1843 = vdwg.mxu0
    %1844 = vmatprep.subr.bf16.mxu0 0
    %1845 = vmatpush1.bf16.msra.mxu0 %v1539
    %1846 = vmatprep.subr.bf16.mxu0 0
    %1847 = vmatpush1.bf16.msra.mxu0 %v1542
    %1848 = vmatprep.subr.bf16.mxu0 0
    %1849 = vmatpush1.bf16.msra.mxu0 %v1545
    %1850 = vmatprep.subr.bf16.mxu0 0
    %1851 = vmatpush1.bf16.msra.mxu0 %v1548
    %1852 = vmatprep.subr.bf16.mxu0 0
    %1853 = vmatpush1.bf16.msra.mxu0 %v1551
    %1854 = vmatprep.subr.bf16.mxu0 0
    %1855 = vmatpush1.bf16.msra.mxu0 %v1554
    %1856 = vmatprep.subr.bf16.mxu0 0
    %1857 = vmatpush1.bf16.msra.mxu0 %v1557
    %1858 = vmatprep.subr.bf16.mxu0 0
    %1859 = vmatpush1.bf16.msra.mxu0 %v1560
    %1860 = vmatprep.subr.bf16.mxu0 0
    %1861 = vmatpush1.bf16.msra.mxu0 0
    %1862 = vmatprep.subr.bf16.mxu0 0
    %1863 = vmatpush1.bf16.msra.mxu0 0
    %1864 = vmatprep.subr.bf16.mxu0 0
    %1865 = vmatpush1.bf16.msra.mxu0 0
    %1866 = vmatprep.subr.bf16.mxu0 0
    %1867 = vmatpush1.bf16.msra.mxu0 0
    %1868 = vmatprep.subr.bf16.mxu0 0
    %1869 = vmatpush1.bf16.msra.mxu0 0
    %1870 = vmatprep.subr.bf16.mxu0 0
    %1871 = vmatpush1.bf16.msra.mxu0 0
    %1872 = vmatprep.subr.bf16.mxu0 0
    %1873 = vmatpush1.bf16.msra.mxu0 0
    %1874 = vmatprep.subr.bf16.mxu0 0
    %1875 = vmatpush1.bf16.msra.mxu0 0
    %1876 = vmatprep.mubr.bf16.mxu0 0
    %1877 = vmatmul.mubr.bf16.gmra.mrb[0].mxu0 %v1212
    %v1878 = vpop.f32.mrb[0].mxu0
    %v1879 = vadd.f32 %v1814, %v1878
    %v1880 = vpop.f32.mrb[0].mxu0
    %v1881 = vpop.f32.mrb[0].mxu0
    %v1882 = vadd.f32 %v1817, %v1881
    %v1883 = vpop.f32.mrb[0].mxu0
    %1884 = vmatprep.mubr.bf16.mxu0 0
    %1885 = vmatmul.mubr.bf16.gmra.mrb[0].mxu0 %v1215
    %v1886 = vpop.f32.mrb[0].mxu0
    %v1887 = vadd.f32 %v1822, %v1886
    %v1888 = vpop.f32.mrb[0].mxu0
    %v1889 = vpop.f32.mrb[0].mxu0
    %v1890 = vadd.f32 %v1825, %v1889
    %v1891 = vpop.f32.mrb[0].mxu0
    %1892 = vmatprep.mubr.bf16.mxu0 0
    %1893 = vmatmul.mubr.bf16.gmra.mrb[0].mxu0 %v1218
    %v1894 = vpop.f32.mrb[0].mxu0
    %v1895 = vadd.f32 %v1830, %v1894
    %v1896 = vpop.f32.mrb[0].mxu0
    %v1897 = vpop.f32.mrb[0].mxu0
    %v1898 = vadd.f32 %v1833, %v1897
    %v1899 = vpop.f32.mrb[0].mxu0
    %1900 = vmatprep.mubr.bf16.mxu0 0
    %1901 = vmatmul.mubr.bf16.gmra.mrb[0].mxu0 %v1221
    %v1902 = vpop.f32.mrb[0].mxu0
    %v1903 = vadd.f32 %v1838, %v1902
    %v1904 = vpop.f32.mrb[0].mxu0
    %v1905 = vpop.f32.mrb[0].mxu0
    %v1906 = vadd.f32 %v1841, %v1905
    %v1907 = vpop.f32.mrb[0].mxu0
    %1908 = vdwg.mxu0
    %v1909 = vmul.f32 %v1741, 0.1
    %v1910 = vmul.f32 %v1743, 0.1
    %v1911 = vmul.f32 %v1879, 0.1
    %v1912 = vmul.f32 %v1745, 0.1
    %v1913 = vmul.f32 %v1747, 0.1
    %v1914 = vmul.f32 %v1882, 0.1
    %v1915 = vmul.f32 %v1751, 0.1
    %v1916 = vmul.f32 %v1753, 0.1
    %v1917 = vmul.f32 %v1887, 0.1
    %v1918 = vmul.f32 %v1755, 0.1
    %v1919 = vmul.f32 %v1757, 0.1
    %v1920 = vmul.f32 %v1890, 0.1
    %v1921 = vmul.f32 %v1761, 0.1
    %v1922 = vmul.f32 %v1763, 0.1
    %v1923 = vmul.f32 %v1895, 0.1
    %v1924 = vmul.f32 %v1765, 0.1
    %v1925 = vmul.f32 %v1767, 0.1
    %v1926 = vmul.f32 %v1898, 0.1
    %v1927 = vmul.f32 %v1771, 0.1
    %v1928 = vmul.f32 %v1773, 0.1
    %v1929 = vmul.f32 %v1903, 0.1
    %v1930 = vmul.f32 %v1775, 0.1
    %v1931 = vmul.f32 %v1777, 0.1
    %v1932 = vmul.f32 %v1906, 0.1
    %v1933 = vmax.f32 %v1741, %v1909
    %v1934 = vmax.f32 %v1743, %v1910
    %v1935 = vmax.f32 %v1879, %v1911
    %v1936 = vmax.f32 %v1745, %v1912
    %v1937 = vmax.f32 %v1747, %v1913
    %v1938 = vmax.f32 %v1882, %v1914
    %v1939 = vmax.f32 %v1751, %v1915
    %v1940 = vmax.f32 %v1753, %v1916
    %v1941 = vmax.f32 %v1887, %v1917
    %v1942 = vmax.f32 %v1755, %v1918
    %v1943 = vmax.f32 %v1757, %v1919
    %v1944 = vmax.f32 %v1890, %v1920
    %v1945 = vmax.f32 %v1761, %v1921
    %v1946 = vmax.f32 %v1763, %v1922
    %v1947 = vmax.f32 %v1895, %v1923
    %v1948 = vmax.f32 %v1765, %v1924
    %v1949 = vmax.f32 %v1767, %v1925
    %v1950 = vmax.f32 %v1898, %v1926
    %v1951 = vmax.f32 %v1771, %v1927
    %v1952 = vmax.f32 %v1773, %v1928
    %v1953 = vmax.f32 %v1903, %v1929
    %v1954 = vmax.f32 %v1775, %v1930
    %v1955 = vmax.f32 %v1777, %v1931
    %v1956 = vmax.f32 %v1906, %v1932
    %v1957 = vld [vmem:[#allocation10] sm:$0xff]
    %v1958 = vld [vmem:[#allocation10 + $0x8] sm:$0xf]
    %v1959 = vld [vmem:[#allocation10 + $0xc] sm:$0xff]
    %v1960 = vld [vmem:[#allocation10 + $0x14] sm:$0xf]
    %v1961 = vld [vmem:[#allocation10 + $0x18] sm:$0xff]
    %v1962 = vld [vmem:[#allocation10 + $0x20] sm:$0xf]
    %v1963 = vld [vmem:[#allocation10 + $0x24] sm:$0xff]
    %v1964 = vld [vmem:[#allocation10 + $0x2c] sm:$0xf]
    %v1965 = vld [vmem:[#allocation10 + $0x30] sm:$0xff]
    %v1966 = vld [vmem:[#allocation10 + $0x38] sm:$0xf]
    %v1967 = vld [vmem:[#allocation10 + $0x3c] sm:$0xff]
    %v1968 = vld [vmem:[#allocation10 + $0x44] sm:$0xf]
    %v1969 = vld [vmem:[#allocation10 + $0x48] sm:$0xff]
    %v1970 = vld [vmem:[#allocation10 + $0x50] sm:$0xf]
    %v1971 = vld [vmem:[#allocation10 + $0x54] sm:$0xff]
    %v1972 = vld [vmem:[#allocation10 + $0x5c] sm:$0xf]
    %v1973 = vld [vmem:[#allocation10 + $0x60] sm:$0xff]
    %v1974 = vld [vmem:[#allocation10 + $0x68] sm:$0xf]
    %v1975 = vld [vmem:[#allocation10 + $0x6c] sm:$0xff]
    %v1976 = vld [vmem:[#allocation10 + $0x74] sm:$0xf]
    %v1977 = vld [vmem:[#allocation10 + $0x78] sm:$0xff]
    %v1978 = vld [vmem:[#allocation10 + $0x80] sm:$0xf]
    %v1979 = vld [vmem:[#allocation10 + $0x84] sm:$0xff]
    %v1980 = vld [vmem:[#allocation10 + $0x8c] sm:$0xf]
    %v1981 = vld [vmem:[#allocation10 + $0x90] sm:$0xff]
    %v1982 = vld [vmem:[#allocation10 + $0x98] sm:$0xf]
    %v1983 = vld [vmem:[#allocation10 + $0x9c] sm:$0xff]
    %v1984 = vld [vmem:[#allocation10 + $0xa4] sm:$0xf]
    %v1985 = vld [vmem:[#allocation10 + $0xa8] sm:$0xff]
    %v1986 = vld [vmem:[#allocation10 + $0xb0] sm:$0xf]
    %v1987 = vld [vmem:[#allocation10 + $0xb4] sm:$0xff]
    %v1988 = vld [vmem:[#allocation10 + $0xbc] sm:$0xf]
    %v1989 = vld [vmem:[#allocation10 + $0xc0] sm:$0xff]
    %v1990 = vld [vmem:[#allocation10 + $0xc8] sm:$0xf]
    %v1991 = vld [vmem:[#allocation10 + $0xcc] sm:$0xff]
    %v1992 = vld [vmem:[#allocation10 + $0xd4] sm:$0xf]
    %v1993 = vld [vmem:[#allocation10 + $0xd8] sm:$0xff]
    %v1994 = vld [vmem:[#allocation10 + $0xe0] sm:$0xf]
    %v1995 = vld [vmem:[#allocation10 + $0xe4] sm:$0xff]
    %v1996 = vld [vmem:[#allocation10 + $0xec] sm:$0xf]
    %v1997 = vld [vmem:[#allocation10 + $0xf0] sm:$0xff]
    %v1998 = vld [vmem:[#allocation10 + $0xf8] sm:$0xf]
    %v1999 = vld [vmem:[#allocation10 + $0xfc] sm:$0xff]
    %v2000 = vld [vmem:[#allocation10 + $0x104] sm:$0xf]
    %v2001 = vld [vmem:[#allocation10 + $0x108] sm:$0xff]
    %v2002 = vld [vmem:[#allocation10 + $0x110] sm:$0xf]
    %v2003 = vld [vmem:[#allocation10 + $0x114] sm:$0xff]
    %v2004 = vld [vmem:[#allocation10 + $0x11c] sm:$0xf]
    %v2005 = vld [vmem:[#allocation10 + $0x120] sm:$0xff]
    %v2006 = vld [vmem:[#allocation10 + $0x128] sm:$0xf]
    %v2007 = vld [vmem:[#allocation10 + $0x12c] sm:$0xff]
    %v2008 = vld [vmem:[#allocation10 + $0x134] sm:$0xf]
    %v2009 = vld [vmem:[#allocation10 + $0x138] sm:$0xff]
    %v2010 = vld [vmem:[#allocation10 + $0x140] sm:$0xf]
    %v2011 = vld [vmem:[#allocation10 + $0x144] sm:$0xff]
    %v2012 = vld [vmem:[#allocation10 + $0x14c] sm:$0xf]
    %v2013 = vld [vmem:[#allocation10 + $0x150] sm:$0xff]
    %v2014 = vld [vmem:[#allocation10 + $0x158] sm:$0xf]
    %v2015 = vld [vmem:[#allocation10 + $0x15c] sm:$0xff]
    %v2016 = vld [vmem:[#allocation10 + $0x164] sm:$0xf]
    %v2017 = vld [vmem:[#allocation10 + $0x168] sm:$0xff]
    %v2018 = vld [vmem:[#allocation10 + $0x170] sm:$0xf]
    %v2019 = vld [vmem:[#allocation10 + $0x174] sm:$0xff]
    %v2020 = vld [vmem:[#allocation10 + $0x17c] sm:$0xf]
    %v2021 = vld [vmem:[#allocation10 + $0x180] sm:$0xff]
    %v2022 = vld [vmem:[#allocation10 + $0x188] sm:$0xf]
    %v2023 = vld [vmem:[#allocation10 + $0x18c] sm:$0xff]
    %v2024 = vld [vmem:[#allocation10 + $0x194] sm:$0xf]
    %v2025 = vld [vmem:[#allocation10 + $0x198] sm:$0xff]
    %v2026 = vld [vmem:[#allocation10 + $0x1a0] sm:$0xf]
    %v2027 = vld [vmem:[#allocation10 + $0x1a4] sm:$0xff]
    %v2028 = vld [vmem:[#allocation10 + $0x1ac] sm:$0xf]
    %v2029 = vld [vmem:[#allocation10 + $0x1b0] sm:$0xff]
    %v2030 = vld [vmem:[#allocation10 + $0x1b8] sm:$0xf]
    %v2031 = vld [vmem:[#allocation10 + $0x1bc] sm:$0xff]
    %v2032 = vld [vmem:[#allocation10 + $0x1c4] sm:$0xf]
    %v2033 = vld [vmem:[#allocation10 + $0x1c8] sm:$0xff]
    %v2034 = vld [vmem:[#allocation10 + $0x1d0] sm:$0xf]
    %v2035 = vld [vmem:[#allocation10 + $0x1d4] sm:$0xff]
    %v2036 = vld [vmem:[#allocation10 + $0x1dc] sm:$0xf]
    %v2037 = vld [vmem:[#allocation10 + $0x1e0] sm:$0xff]
    %v2038 = vld [vmem:[#allocation10 + $0x1e8] sm:$0xf]
    %v2039 = vld [vmem:[#allocation10 + $0x1ec] sm:$0xff]
    %v2040 = vld [vmem:[#allocation10 + $0x1f4] sm:$0xf]
    %v2041 = vld [vmem:[#allocation10 + $0x1f8] sm:$0xff]
    %v2042 = vld [vmem:[#allocation10 + $0x200] sm:$0xf]
    %v2043 = vld [vmem:[#allocation10 + $0x204] sm:$0xff]
    %v2044 = vld [vmem:[#allocation10 + $0x20c] sm:$0xf]
    %v2045 = vld [vmem:[#allocation10 + $0x210] sm:$0xff]
    %v2046 = vld [vmem:[#allocation10 + $0x218] sm:$0xf]
    %v2047 = vld [vmem:[#allocation10 + $0x21c] sm:$0xff]
    %v2048 = vld [vmem:[#allocation10 + $0x224] sm:$0xf]
    %v2049 = vld [vmem:[#allocation10 + $0x228] sm:$0xff]
    %v2050 = vld [vmem:[#allocation10 + $0x230] sm:$0xf]
    %v2051 = vld [vmem:[#allocation10 + $0x234] sm:$0xff]
    %v2052 = vld [vmem:[#allocation10 + $0x23c] sm:$0xf]
    %v2053 = vpack.c.bf16 %v1936, %v1933
    %v2054 = vpack.c.bf16 %v1937, %v1934
    %v2055 = vpack.c.bf16 %v1938, %v1935
    %v2056 = vpack.c.bf16 %v1942, %v1939
    %v2057 = vpack.c.bf16 %v1943, %v1940
    %v2058 = vpack.c.bf16 %v1944, %v1941
    %v2059 = vpack.c.bf16 %v1948, %v1945
    %v2060 = vpack.c.bf16 %v1949, %v1946
    %v2061 = vpack.c.bf16 %v1950, %v1947
    %v2062 = vpack.c.bf16 %v1954, %v1951
    %v2063 = vpack.c.bf16 %v1955, %v1952
    %v2064 = vpack.c.bf16 %v1956, %v1953
    %v2065 = vlaneseq
    %v2066 = vshrl.u32 %v2065, 7
    %v2067 = vsub.s32 2, %v2066
    %v2068 = vrot.slane %v109, %v2067
    %v2069 = vlaneseq
    %v2070 = vshrl.u32 %v2069, 7
    %v2071 = vsub.s32 6, %v2070
    %v2072 = vrot.slane %v109, %v2071
    %v2073 = vlaneseq
    %v2074 = vshrl.u32 %v2073, 7
    %v2075 = vsub.s32 2, %v2074
    %v2076 = vrot.slane %v110, %v2075
    %v2080 = vlaneseq
    %v2081 = vshrl.u32 %v2080, 7
    %v2082 = vsub.s32 2, %v2081
    %v2083 = vrot.slane %v2068, %v2082
    %v2084 = vlaneseq
    %v2085 = vshrl.u32 %v2084, 7
    %v2086 = vsub.s32 2, %v2085
    %v2087 = vrot.slane %v2072, %v2086
    %v2088 = vlaneseq
    %v2089 = vshrl.u32 %v2088, 7
    %v2090 = vsub.s32 2, %v2089
    %v2091 = vrot.slane %v2076, %v2090
    %v2188 = vunpack.c.l.b16 %v1957
    %v2189 = vunpack.c.h.b16 %v1957
    %v2190 = vunpack.c.l.b16 %v1958
    %v2191 = vunpack.c.l.b16 %v1959
    %v2192 = vunpack.c.h.b16 %v1959
    %v2193 = vunpack.c.l.b16 %v1960
    %v2194 = vunpack.c.l.b16 %v1961
    %v2195 = vunpack.c.h.b16 %v1961
    %v2196 = vunpack.c.l.b16 %v1962
    %v2197 = vunpack.c.l.b16 %v1963
    %v2198 = vunpack.c.h.b16 %v1963
    %v2199 = vunpack.c.l.b16 %v1964
    %v2200 = vunpack.c.l.b16 %v1965
    %v2201 = vunpack.c.h.b16 %v1965
    %v2202 = vunpack.c.l.b16 %v1966
    %v2203 = vunpack.c.l.b16 %v1967
    %v2204 = vunpack.c.h.b16 %v1967
    %v2205 = vunpack.c.l.b16 %v1968
    %v2206 = vunpack.c.l.b16 %v1969
    %v2207 = vunpack.c.h.b16 %v1969
    %v2208 = vunpack.c.l.b16 %v1970
    %v2209 = vunpack.c.l.b16 %v1971
    %v2210 = vunpack.c.h.b16 %v1971
    %v2211 = vunpack.c.l.b16 %v1972
    %v2212 = vunpack.c.l.b16 %v1973
    %v2213 = vunpack.c.h.b16 %v1973
    %v2214 = vunpack.c.l.b16 %v1974
    %v2215 = vunpack.c.l.b16 %v1975
    %v2216 = vunpack.c.h.b16 %v1975
    %v2217 = vunpack.c.l.b16 %v1976
    %v2218 = vunpack.c.l.b16 %v1977
    %v2219 = vunpack.c.h.b16 %v1977
    %v2220 = vunpack.c.l.b16 %v1978
    %v2221 = vunpack.c.l.b16 %v1979
    %v2222 = vunpack.c.h.b16 %v1979
    %v2223 = vunpack.c.l.b16 %v1980
    %v2224 = vunpack.c.l.b16 %v1981
    %v2225 = vunpack.c.h.b16 %v1981
    %v2226 = vunpack.c.l.b16 %v1982
    %v2227 = vunpack.c.l.b16 %v1983
    %v2228 = vunpack.c.h.b16 %v1983
    %v2229 = vunpack.c.l.b16 %v1984
    %v2230 = vunpack.c.l.b16 %v1985
    %v2231 = vunpack.c.h.b16 %v1985
    %v2232 = vunpack.c.l.b16 %v1986
    %v2233 = vunpack.c.l.b16 %v1987
    %v2234 = vunpack.c.h.b16 %v1987
    %v2235 = vunpack.c.l.b16 %v1988
    %v2236 = vunpack.c.l.b16 %v1989
    %v2237 = vunpack.c.h.b16 %v1989
    %v2238 = vunpack.c.l.b16 %v1990
    %v2239 = vunpack.c.l.b16 %v1991
    %v2240 = vunpack.c.h.b16 %v1991
    %v2241 = vunpack.c.l.b16 %v1992
    %v2242 = vunpack.c.l.b16 %v1993
    %v2243 = vunpack.c.h.b16 %v1993
    %v2244 = vunpack.c.l.b16 %v1994
    %v2245 = vunpack.c.l.b16 %v1995
    %v2246 = vunpack.c.h.b16 %v1995
    %v2247 = vunpack.c.l.b16 %v1996
    %v2248 = vunpack.c.l.b16 %v1997
    %v2249 = vunpack.c.h.b16 %v1997
    %v2250 = vunpack.c.l.b16 %v1998
    %v2251 = vunpack.c.l.b16 %v1999
    %v2252 = vunpack.c.h.b16 %v1999
    %v2253 = vunpack.c.l.b16 %v2000
    %v2254 = vunpack.c.l.b16 %v2001
    %v2255 = vunpack.c.h.b16 %v2001
    %v2256 = vunpack.c.l.b16 %v2002
    %v2257 = vunpack.c.l.b16 %v2003
    %v2258 = vunpack.c.h.b16 %v2003
    %v2259 = vunpack.c.l.b16 %v2004
    %v2260 = vunpack.c.l.b16 %v2005
    %v2261 = vunpack.c.h.b16 %v2005
    %v2262 = vunpack.c.l.b16 %v2006
    %v2263 = vunpack.c.l.b16 %v2007
    %v2264 = vunpack.c.h.b16 %v2007
    %v2265 = vunpack.c.l.b16 %v2008
    %v2266 = vunpack.c.l.b16 %v2009
    %v2267 = vunpack.c.h.b16 %v2009
    %v2268 = vunpack.c.l.b16 %v2010
    %v2269 = vunpack.c.l.b16 %v2011
    %v2270 = vunpack.c.h.b16 %v2011
    %v2271 = vunpack.c.l.b16 %v2012
    %v2272 = vunpack.c.l.b16 %v2013
    %v2273 = vunpack.c.h.b16 %v2013
    %v2274 = vunpack.c.l.b16 %v2014
    %v2275 = vunpack.c.l.b16 %v2015
    %v2276 = vunpack.c.h.b16 %v2015
    %v2277 = vunpack.c.l.b16 %v2016
    %v2278 = vunpack.c.l.b16 %v2017
    %v2279 = vunpack.c.h.b16 %v2017
    %v2280 = vunpack.c.l.b16 %v2018
    %v2281 = vunpack.c.l.b16 %v2019
    %v2282 = vunpack.c.h.b16 %v2019
    %v2283 = vunpack.c.l.b16 %v2020
    %v2284 = vunpack.c.l.b16 %v2021
    %v2285 = vunpack.c.h.b16 %v2021
    %v2286 = vunpack.c.l.b16 %v2022
    %v2287 = vunpack.c.l.b16 %v2023
    %v2288 = vunpack.c.h.b16 %v2023
    %v2289 = vunpack.c.l.b16 %v2024
    %v2290 = vunpack.c.l.b16 %v2025
    %v2291 = vunpack.c.h.b16 %v2025
    %v2292 = vunpack.c.l.b16 %v2026
    %v2293 = vunpack.c.l.b16 %v2027
    %v2294 = vunpack.c.h.b16 %v2027
    %v2295 = vunpack.c.l.b16 %v2028
    %v2296 = vunpack.c.l.b16 %v2029
    %v2297 = vunpack.c.h.b16 %v2029
    %v2298 = vunpack.c.l.b16 %v2030
    %v2299 = vunpack.c.l.b16 %v2031
    %v2300 = vunpack.c.h.b16 %v2031
    %v2301 = vunpack.c.l.b16 %v2032
    %v2302 = vunpack.c.l.b16 %v2033
    %v2303 = vunpack.c.h.b16 %v2033
    %v2304 = vunpack.c.l.b16 %v2034
    %v2305 = vunpack.c.l.b16 %v2035
    %v2306 = vunpack.c.h.b16 %v2035
    %v2307 = vunpack.c.l.b16 %v2036
    %v2308 = vunpack.c.l.b16 %v2037
    %v2309 = vunpack.c.h.b16 %v2037
    %v2310 = vunpack.c.l.b16 %v2038
    %v2311 = vunpack.c.l.b16 %v2039
    %v2312 = vunpack.c.h.b16 %v2039
    %v2313 = vunpack.c.l.b16 %v2040
    %v2314 = vunpack.c.l.b16 %v2041
    %v2315 = vunpack.c.h.b16 %v2041
    %v2316 = vunpack.c.l.b16 %v2042
    %v2317 = vunpack.c.l.b16 %v2043
    %v2318 = vunpack.c.h.b16 %v2043
    %v2319 = vunpack.c.l.b16 %v2044
    %v2320 = vunpack.c.l.b16 %v2045
    %v2321 = vunpack.c.h.b16 %v2045
    %v2322 = vunpack.c.l.b16 %v2046
    %v2323 = vunpack.c.l.b16 %v2047
    %v2324 = vunpack.c.h.b16 %v2047
    %v2325 = vunpack.c.l.b16 %v2048
    %v2326 = vunpack.c.l.b16 %v2049
    %v2327 = vunpack.c.h.b16 %v2049
    %v2328 = vunpack.c.l.b16 %v2050
    %v2329 = vunpack.c.l.b16 %v2051
    %v2330 = vunpack.c.h.b16 %v2051
    %v2331 = vunpack.c.l.b16 %v2052
    %v2332 = vpack.c.b16 %v2191, %v2188
    %v2333 = vpack.c.b16 %v2192, %v2189
    %v2334 = vpack.c.b16 %v2193, %v2190
    %v2335 = vpack.c.b16 %v2197, %v2194
    %v2336 = vpack.c.b16 %v2198, %v2195
    %v2337 = vpack.c.b16 %v2199, %v2196
    %v2338 = vpack.c.b16 %v2203, %v2200
    %v2339 = vpack.c.b16 %v2204, %v2201
    %v2340 = vpack.c.b16 %v2205, %v2202
    %v2341 = vpack.c.b16 %v2209, %v2206
    %v2342 = vpack.c.b16 %v2210, %v2207
    %v2343 = vpack.c.b16 %v2211, %v2208
    %v2344 = vpack.c.b16 %v2215, %v2212
    %v2345 = vpack.c.b16 %v2216, %v2213
    %v2346 = vpack.c.b16 %v2217, %v2214
    %v2347 = vpack.c.b16 %v2221, %v2218
    %v2348 = vpack.c.b16 %v2222, %v2219
    %v2349 = vpack.c.b16 %v2223, %v2220
    %v2350 = vpack.c.b16 %v2227, %v2224
    %v2351 = vpack.c.b16 %v2228, %v2225
    %v2352 = vpack.c.b16 %v2229, %v2226
    %v2353 = vpack.c.b16 %v2233, %v2230
    %v2354 = vpack.c.b16 %v2234, %v2231
    %v2355 = vpack.c.b16 %v2235, %v2232
    %v2356 = vpack.c.b16 %v2239, %v2236
    %v2357 = vpack.c.b16 %v2240, %v2237
    %v2358 = vpack.c.b16 %v2241, %v2238
    %v2359 = vpack.c.b16 %v2245, %v2242
    %v2360 = vpack.c.b16 %v2246, %v2243
    %v2361 = vpack.c.b16 %v2247, %v2244
    %v2362 = vpack.c.b16 %v2251, %v2248
    %v2363 = vpack.c.b16 %v2252, %v2249
    %v2364 = vpack.c.b16 %v2253, %v2250
    %v2365 = vpack.c.b16 %v2257, %v2254
    %v2366 = vpack.c.b16 %v2258, %v2255
    %v2367 = vpack.c.b16 %v2259, %v2256
    %v2368 = vpack.c.b16 %v2263, %v2260
    %v2369 = vpack.c.b16 %v2264, %v2261
    %v2370 = vpack.c.b16 %v2265, %v2262
    %v2371 = vpack.c.b16 %v2269, %v2266
    %v2372 = vpack.c.b16 %v2270, %v2267
    %v2373 = vpack.c.b16 %v2271, %v2268
    %v2374 = vpack.c.b16 %v2275, %v2272
    %v2375 = vpack.c.b16 %v2276, %v2273
    %v2376 = vpack.c.b16 %v2277, %v2274
    %v2377 = vpack.c.b16 %v2281, %v2278
    %v2378 = vpack.c.b16 %v2282, %v2279
    %v2379 = vpack.c.b16 %v2283, %v2280
    %v2380 = vpack.c.b16 %v2287, %v2284
    %v2381 = vpack.c.b16 %v2288, %v2285
    %v2382 = vpack.c.b16 %v2289, %v2286
    %v2383 = vpack.c.b16 %v2293, %v2290
    %v2384 = vpack.c.b16 %v2294, %v2291
    %v2385 = vpack.c.b16 %v2295, %v2292
    %v2386 = vpack.c.b16 %v2299, %v2296
    %v2387 = vpack.c.b16 %v2300, %v2297
    %v2388 = vpack.c.b16 %v2301, %v2298
    %v2389 = vpack.c.b16 %v2305, %v2302
    %v2390 = vpack.c.b16 %v2306, %v2303
    %v2391 = vpack.c.b16 %v2307, %v2304
    %v2392 = vpack.c.b16 %v2311, %v2308
    %v2393 = vpack.c.b16 %v2312, %v2309
    %v2394 = vpack.c.b16 %v2313, %v2310
    %v2395 = vpack.c.b16 %v2317, %v2314
    %v2396 = vpack.c.b16 %v2318, %v2315
    %v2397 = vpack.c.b16 %v2319, %v2316
    %v2398 = vpack.c.b16 %v2323, %v2320
    %v2399 = vpack.c.b16 %v2324, %v2321
    %v2400 = vpack.c.b16 %v2325, %v2322
    %v2401 = vpack.c.b16 %v2329, %v2326
    %v2402 = vpack.c.b16 %v2330, %v2327
    %v2403 = vpack.c.b16 %v2331, %v2328
    %2476 = vmatprep.subr.bf16.mxu0 %v2333
    %2477 = vmatpush1.bf16.msra.mxu0 %v2332
    %2478 = vmatprep.subr.bf16.mxu0 %v2336
    %2479 = vmatpush1.bf16.msra.mxu0 %v2335
    %2480 = vmatprep.subr.bf16.mxu0 %v2339
    %2481 = vmatpush1.bf16.msra.mxu0 %v2338
    %2482 = vmatprep.subr.bf16.mxu0 %v2342
    %2483 = vmatpush1.bf16.msra.mxu0 %v2341
    %2484 = vmatprep.subr.bf16.mxu0 %v2345
    %2485 = vmatpush1.bf16.msra.mxu0 %v2344
    %2486 = vmatprep.subr.bf16.mxu0 %v2348
    %2487 = vmatpush1.bf16.msra.mxu0 %v2347
    %2488 = vmatprep.subr.bf16.mxu0 %v2351
    %2489 = vmatpush1.bf16.msra.mxu0 %v2350
    %2490 = vmatprep.subr.bf16.mxu0 %v2354
    %2491 = vmatpush1.bf16.msra.mxu0 %v2353
    %2492 = vmatprep.subr.bf16.mxu0 %v2357
    %2493 = vmatpush1.bf16.msra.mxu0 %v2356
    %2494 = vmatprep.subr.bf16.mxu0 %v2360
    %2495 = vmatpush1.bf16.msra.mxu0 %v2359
    %2496 = vmatprep.subr.bf16.mxu0 %v2363
    %2497 = vmatpush1.bf16.msra.mxu0 %v2362
    %2498 = vmatprep.subr.bf16.mxu0 %v2366
    %2499 = vmatpush1.bf16.msra.mxu0 %v2365
    %2500 = vmatprep.subr.bf16.mxu0 %v2369
    %2501 = vmatpush1.bf16.msra.mxu0 %v2368
    %2502 = vmatprep.subr.bf16.mxu0 %v2372
    %2503 = vmatpush1.bf16.msra.mxu0 %v2371
    %2504 = vmatprep.subr.bf16.mxu0 %v2375
    %2505 = vmatpush1.bf16.msra.mxu0 %v2374
    %2506 = vmatprep.subr.bf16.mxu0 %v2378
    %2507 = vmatpush1.bf16.msra.mxu0 %v2377
    %2508 = vmatprep.mubr.bf16.mxu0 %v2054
    %2509 = vmatmul.mubr.bf16.gmra.mrb[0].mxu0 %v2053
    %v2510 = vpop.f32.mrb[0].mxu0
    %v2511 = vadd.f32 %v2083, %v2510
    %v2512 = vpop.f32.mrb[0].mxu0
    %v2513 = vadd.f32 %v2087, %v2512
    %v2514 = vpop.f32.mrb[0].mxu0
    %v2515 = vadd.f32 %v2083, %v2514
    %v2516 = vpop.f32.mrb[0].mxu0
    %v2517 = vadd.f32 %v2087, %v2516
    %2518 = vmatprep.mubr.bf16.mxu0 %v2057
    %2519 = vmatmul.mubr.bf16.gmra.mrb[0].mxu0 %v2056
    %v2520 = vpop.f32.mrb[0].mxu0
    %v2521 = vadd.f32 %v2083, %v2520
    %v2522 = vpop.f32.mrb[0].mxu0
    %v2523 = vadd.f32 %v2087, %v2522
    %v2524 = vpop.f32.mrb[0].mxu0
    %v2525 = vadd.f32 %v2083, %v2524
    %v2526 = vpop.f32.mrb[0].mxu0
    %v2527 = vadd.f32 %v2087, %v2526
    %2528 = vmatprep.mubr.bf16.mxu0 %v2060
    %2529 = vmatmul.mubr.bf16.gmra.mrb[0].mxu0 %v2059
    %v2530 = vpop.f32.mrb[0].mxu0
    %v2531 = vadd.f32 %v2083, %v2530
    %v2532 = vpop.f32.mrb[0].mxu0
    %v2533 = vadd.f32 %v2087, %v2532
    %v2534 = vpop.f32.mrb[0].mxu0
    %v2535 = vadd.f32 %v2083, %v2534
    %v2536 = vpop.f32.mrb[0].mxu0
    %v2537 = vadd.f32 %v2087, %v2536
    %2538 = vmatprep.mubr.bf16.mxu0 %v2063
    %2539 = vmatmul.mubr.bf16.gmra.mrb[0].mxu0 %v2062
    %v2540 = vpop.f32.mrb[0].mxu0
    %v2541 = vadd.f32 %v2083, %v2540
    %v2542 = vpop.f32.mrb[0].mxu0
    %v2543 = vadd.f32 %v2087, %v2542
    %v2544 = vpop.f32.mrb[0].mxu0
    %v2545 = vadd.f32 %v2083, %v2544
    %v2546 = vpop.f32.mrb[0].mxu0
    %v2547 = vadd.f32 %v2087, %v2546
    %2548 = vdwg.mxu0
    %2549 = vmatprep.subr.bf16.mxu0 %v2381
    %2550 = vmatpush1.bf16.msra.mxu0 %v2380
    %2551 = vmatprep.subr.bf16.mxu0 %v2384
    %2552 = vmatpush1.bf16.msra.mxu0 %v2383
    %2553 = vmatprep.subr.bf16.mxu0 %v2387
    %2554 = vmatpush1.bf16.msra.mxu0 %v2386
    %2555 = vmatprep.subr.bf16.mxu0 %v2390
    %2556 = vmatpush1.bf16.msra.mxu0 %v2389
    %2557 = vmatprep.subr.bf16.mxu0 %v2393
    %2558 = vmatpush1.bf16.msra.mxu0 %v2392
    %2559 = vmatprep.subr.bf16.mxu0 %v2396
    %2560 = vmatpush1.bf16.msra.mxu0 %v2395
    %2561 = vmatprep.subr.bf16.mxu0 %v2399
    %2562 = vmatpush1.bf16.msra.mxu0 %v2398
    %2563 = vmatprep.subr.bf16.mxu0 %v2402
    %2564 = vmatpush1.bf16.msra.mxu0 %v2401
    %2565 = vmatprep.subr.bf16.mxu0 0
    %2566 = vmatpush1.bf16.msra.mxu0 0
    %2567 = vmatprep.subr.bf16.mxu0 0
    %2568 = vmatpush1.bf16.msra.mxu0 0
    %2569 = vmatprep.subr.bf16.mxu0 0
    %2570 = vmatpush1.bf16.msra.mxu0 0
    %2571 = vmatprep.subr.bf16.mxu0 0
    %2572 = vmatpush1.bf16.msra.mxu0 0
    %2573 = vmatprep.subr.bf16.mxu0 0
    %2574 = vmatpush1.bf16.msra.mxu0 0
    %2575 = vmatprep.subr.bf16.mxu0 0
    %2576 = vmatpush1.bf16.msra.mxu0 0
    %2577 = vmatprep.subr.bf16.mxu0 0
    %2578 = vmatpush1.bf16.msra.mxu0 0
    %2579 = vmatprep.subr.bf16.mxu0 0
    %2580 = vmatpush1.bf16.msra.mxu0 0
    %2581 = vmatprep.mubr.bf16.mxu0 0
    %2582 = vmatmul.mubr.bf16.gmra.mrb[0].mxu0 %v2055
    %v2583 = vpop.f32.mrb[0].mxu0
    %v2584 = vadd.f32 %v2511, %v2583
    %v2585 = vpop.f32.mrb[0].mxu0
    %v2586 = vadd.f32 %v2513, %v2585
    %v2587 = vpop.f32.mrb[0].mxu0
    %v2588 = vadd.f32 %v2515, %v2587
    %v2589 = vpop.f32.mrb[0].mxu0
    %v2590 = vadd.f32 %v2517, %v2589
    %2591 = vmatprep.mubr.bf16.mxu0 0
    %2592 = vmatmul.mubr.bf16.gmra.mrb[0].mxu0 %v2058
    %v2593 = vpop.f32.mrb[0].mxu0
    %v2594 = vadd.f32 %v2521, %v2593
    %v2595 = vpop.f32.mrb[0].mxu0
    %v2596 = vadd.f32 %v2523, %v2595
    %v2597 = vpop.f32.mrb[0].mxu0
    %v2598 = vadd.f32 %v2525, %v2597
    %v2599 = vpop.f32.mrb[0].mxu0
    %v2600 = vadd.f32 %v2527, %v2599
    %2601 = vmatprep.mubr.bf16.mxu0 0
    %2602 = vmatmul.mubr.bf16.gmra.mrb[0].mxu0 %v2061
    %v2603 = vpop.f32.mrb[0].mxu0
    %v2604 = vadd.f32 %v2531, %v2603
    %v2605 = vpop.f32.mrb[0].mxu0
    %v2606 = vadd.f32 %v2533, %v2605
    %v2607 = vpop.f32.mrb[0].mxu0
    %v2608 = vadd.f32 %v2535, %v2607
    %v2609 = vpop.f32.mrb[0].mxu0
    %v2610 = vadd.f32 %v2537, %v2609
    %2611 = vmatprep.mubr.bf16.mxu0 0
    %2612 = vmatmul.mubr.bf16.gmra.mrb[0].mxu0 %v2064
    %v2613 = vpop.f32.mrb[0].mxu0
    %v2614 = vadd.f32 %v2541, %v2613
    %v2615 = vpop.f32.mrb[0].mxu0
    %v2616 = vadd.f32 %v2543, %v2615
    %v2617 = vpop.f32.mrb[0].mxu0
    %v2618 = vadd.f32 %v2545, %v2617
    %v2619 = vpop.f32.mrb[0].mxu0
    %v2620 = vadd.f32 %v2547, %v2619
    %2621 = vdwg.mxu0
    %2622 = vmatprep.subr.bf16.mxu0 0
    %2623 = vmatpush1.bf16.msra.mxu0 %v2334
    %2624 = vmatprep.subr.bf16.mxu0 0
    %2625 = vmatpush1.bf16.msra.mxu0 %v2337
    %2626 = vmatprep.subr.bf16.mxu0 0
    %2627 = vmatpush1.bf16.msra.mxu0 %v2340
    %2628 = vmatprep.subr.bf16.mxu0 0
    %2629 = vmatpush1.bf16.msra.mxu0 %v2343
    %2630 = vmatprep.subr.bf16.mxu0 0
    %2631 = vmatpush1.bf16.msra.mxu0 %v2346
    %2632 = vmatprep.subr.bf16.mxu0 0
    %2633 = vmatpush1.bf16.msra.mxu0 %v2349
    %2634 = vmatprep.subr.bf16.mxu0 0
    %2635 = vmatpush1.bf16.msra.mxu0 %v2352
    %2636 = vmatprep.subr.bf16.mxu0 0
    %2637 = vmatpush1.bf16.msra.mxu0 %v2355
    %2638 = vmatprep.subr.bf16.mxu0 0
    %2639 = vmatpush1.bf16.msra.mxu0 %v2358
    %2640 = vmatprep.subr.bf16.mxu0 0
    %2641 = vmatpush1.bf16.msra.mxu0 %v2361
    %2642 = vmatprep.subr.bf16.mxu0 0
    %2643 = vmatpush1.bf16.msra.mxu0 %v2364
    %2644 = vmatprep.subr.bf16.mxu0 0
    %2645 = vmatpush1.bf16.msra.mxu0 %v2367
    %2646 = vmatprep.subr.bf16.mxu0 0
    %2647 = vmatpush1.bf16.msra.mxu0 %v2370
    %2648 = vmatprep.subr.bf16.mxu0 0
    %2649 = vmatpush1.bf16.msra.mxu0 %v2373
    %2650 = vmatprep.subr.bf16.mxu0 0
    %2651 = vmatpush1.bf16.msra.mxu0 %v2376
    %2652 = vmatprep.subr.bf16.mxu0 0
    %2653 = vmatpush1.bf16.msra.mxu0 %v2379
    %2654 = vmatprep.mubr.bf16.mxu0 %v2054
    %2655 = vmatmul.mubr.bf16.gmra.mrb[0].mxu0 %v2053
    %v2656 = vpop.f32.mrb[0].mxu0
    %v2657 = vadd.f32 %v2091, %v2656
    %v2658 = vpop.f32.mrb[0].mxu0
    %v2659 = vpop.f32.mrb[0].mxu0
    %v2660 = vadd.f32 %v2091, %v2659
    %v2661 = vpop.f32.mrb[0].mxu0
    %2662 = vmatprep.mubr.bf16.mxu0 %v2057
    %2663 = vmatmul.mubr.bf16.gmra.mrb[0].mxu0 %v2056
    %v2664 = vpop.f32.mrb[0].mxu0
    %v2665 = vadd.f32 %v2091, %v2664
    %v2666 = vpop.f32.mrb[0].mxu0
    %v2667 = vpop.f32.mrb[0].mxu0
    %v2668 = vadd.f32 %v2091, %v2667
    %v2669 = vpop.f32.mrb[0].mxu0
    %2670 = vmatprep.mubr.bf16.mxu0 %v2060
    %2671 = vmatmul.mubr.bf16.gmra.mrb[0].mxu0 %v2059
    %v2672 = vpop.f32.mrb[0].mxu0
    %v2673 = vadd.f32 %v2091, %v2672
    %v2674 = vpop.f32.mrb[0].mxu0
    %v2675 = vpop.f32.mrb[0].mxu0
    %v2676 = vadd.f32 %v2091, %v2675
    %v2677 = vpop.f32.mrb[0].mxu0
    %2678 = vmatprep.mubr.bf16.mxu0 %v2063
    %2679 = vmatmul.mubr.bf16.gmra.mrb[0].mxu0 %v2062
    %v2680 = vpop.f32.mrb[0].mxu0
    %v2681 = vadd.f32 %v2091, %v2680
    %v2682 = vpop.f32.mrb[0].mxu0
    %v2683 = vpop.f32.mrb[0].mxu0
    %v2684 = vadd.f32 %v2091, %v2683
    %v2685 = vpop.f32.mrb[0].mxu0
    %2686 = vdwg.mxu0
    %2687 = vmatprep.subr.bf16.mxu0 0
    %2688 = vmatpush1.bf16.msra.mxu0 %v2382
    %2689 = vmatprep.subr.bf16.mxu0 0
    %2690 = vmatpush1.bf16.msra.mxu0 %v2385
    %2691 = vmatprep.subr.bf16.mxu0 0
    %2692 = vmatpush1.bf16.msra.mxu0 %v2388
    %2693 = vmatprep.subr.bf16.mxu0 0
    %2694 = vmatpush1.bf16.msra.mxu0 %v2391
    %2695 = vmatprep.subr.bf16.mxu0 0
    %2696 = vmatpush1.bf16.msra.mxu0 %v2394
    %2697 = vmatprep.subr.bf16.mxu0 0
    %2698 = vmatpush1.bf16.msra.mxu0 %v2397
    %2699 = vmatprep.subr.bf16.mxu0 0
    %2700 = vmatpush1.bf16.msra.mxu0 %v2400
    %2701 = vmatprep.subr.bf16.mxu0 0
    %2702 = vmatpush1.bf16.msra.mxu0 %v2403
    %2703 = vmatprep.subr.bf16.mxu0 0
    %2704 = vmatpush1.bf16.msra.mxu0 0
    %2705 = vmatprep.subr.bf16.mxu0 0
    %2706 = vmatpush1.bf16.msra.mxu0 0
    %2707 = vmatprep.subr.bf16.mxu0 0
    %2708 = vmatpush1.bf16.msra.mxu0 0
    %2709 = vmatprep.subr.bf16.mxu0 0
    %2710 = vmatpush1.bf16.msra.mxu0 0
    %2711 = vmatprep.subr.bf16.mxu0 0
    %2712 = vmatpush1.bf16.msra.mxu0 0
    %2713 = vmatprep.subr.bf16.mxu0 0
    %2714 = vmatpush1.bf16.msra.mxu0 0
    %2715 = vmatprep.subr.bf16.mxu0 0
    %2716 = vmatpush1.bf16.msra.mxu0 0
    %2717 = vmatprep.subr.bf16.mxu0 0
    %2718 = vmatpush1.bf16.msra.mxu0 0
    %2719 = vmatprep.mubr.bf16.mxu0 0
    %2720 = vmatmul.mubr.bf16.gmra.mrb[0].mxu0 %v2055
    %v2721 = vpop.f32.mrb[0].mxu0
    %v2722 = vadd.f32 %v2657, %v2721
    %v2723 = vpop.f32.mrb[0].mxu0
    %v2724 = vpop.f32.mrb[0].mxu0
    %v2725 = vadd.f32 %v2660, %v2724
    %v2726 = vpop.f32.mrb[0].mxu0
    %2727 = vmatprep.mubr.bf16.mxu0 0
    %2728 = vmatmul.mubr.bf16.gmra.mrb[0].mxu0 %v2058
    %v2729 = vpop.f32.mrb[0].mxu0
    %v2730 = vadd.f32 %v2665, %v2729
    %v2731 = vpop.f32.mrb[0].mxu0
    %v2732 = vpop.f32.mrb[0].mxu0
    %v2733 = vadd.f32 %v2668, %v2732
    %v2734 = vpop.f32.mrb[0].mxu0
    %2735 = vmatprep.mubr.bf16.mxu0 0
    %2736 = vmatmul.mubr.bf16.gmra.mrb[0].mxu0 %v2061
    %v2737 = vpop.f32.mrb[0].mxu0
    %v2738 = vadd.f32 %v2673, %v2737
    %v2739 = vpop.f32.mrb[0].mxu0
    %v2740 = vpop.f32.mrb[0].mxu0
    %v2741 = vadd.f32 %v2676, %v2740
    %v2742 = vpop.f32.mrb[0].mxu0
    %2743 = vmatprep.mubr.bf16.mxu0 0
    %2744 = vmatmul.mubr.bf16.gmra.mrb[0].mxu0 %v2064
    %v2745 = vpop.f32.mrb[0].mxu0
    %v2746 = vadd.f32 %v2681, %v2745
    %v2747 = vpop.f32.mrb[0].mxu0
    %v2748 = vpop.f32.mrb[0].mxu0
    %v2749 = vadd.f32 %v2684, %v2748
    %v2750 = vpop.f32.mrb[0].mxu0
    %2751 = vdwg.mxu0
    %2752 = vadd.xlane.f32.xlu0 %v2584
    %v2753 = vpop.xlane.xlu0 %2752
    %2754 = vadd.xlane.f32.xlu0 %v2588
    %v2755 = vpop.xlane.xlu0 %2754
    %2756 = vadd.xlane.f32.xlu0 %v2594
    %v2757 = vpop.xlane.xlu0 %2756
    %2758 = vadd.xlane.f32.xlu0 %v2598
    %v2759 = vpop.xlane.xlu0 %2758
    %2760 = vadd.xlane.f32.xlu0 %v2604
    %v2761 = vpop.xlane.xlu0 %2760
    %2762 = vadd.xlane.f32.xlu0 %v2608
    %v2763 = vpop.xlane.xlu0 %2762
    %2764 = vadd.xlane.f32.xlu0 %v2614
    %v2765 = vpop.xlane.xlu0 %2764
    %2766 = vadd.xlane.f32.xlu0 %v2618
    %v2767 = vpop.xlane.xlu0 %2766
    %v2768 = vmul.f32 %v2753, 0.125
    %v2769 = vmul.f32 %v2755, 0.125
    %v2770 = vmul.f32 %v2757, 0.125
    %v2771 = vmul.f32 %v2759, 0.125
    %v2772 = vmul.f32 %v2761, 0.125
    %v2773 = vmul.f32 %v2763, 0.125
    %v2774 = vmul.f32 %v2765, 0.125
    %v2775 = vmul.f32 %v2767, 0.125
    %2777 = vset.pattern.permute.xlu0 0
    %2778 = vperm.xlu0 %2777, %v731
    %v2779 = vpop.permute.xlu0 %2778
    %2782 = vset.pattern.permute.xlu0 0
    %2783 = vperm.xlu0 %2782, %v732
    %v2784 = vpop.permute.xlu0 %2783
    %2787 = vset.pattern.permute.xlu0 0
    %2788 = vperm.xlu0 %2787, %v733
    %v2789 = vpop.permute.xlu0 %2788
    %2792 = vset.pattern.permute.xlu0 0
    %2793 = vperm.xlu0 %2792, %v734
    %v2794 = vpop.permute.xlu0 %2793
    %2797 = vset.pattern.permute.xlu0 0
    %2798 = vperm.xlu0 %2797, %v735
    %v2799 = vpop.permute.xlu0 %2798
    %2802 = vset.pattern.permute.xlu0 0
    %2803 = vperm.xlu0 %2802, %v736
    %v2804 = vpop.permute.xlu0 %2803
    %2807 = vset.pattern.permute.xlu0 0
    %2808 = vperm.xlu0 %2807, %v737
    %v2809 = vpop.permute.xlu0 %2808
    %2812 = vset.pattern.permute.xlu0 0
    %2813 = vperm.xlu0 %2812, %v738
    %v2814 = vpop.permute.xlu0 %2813
    %v2816 = vadd.f32 %v2779, %v2584
    %v2817 = vadd.f32 %v2784, %v2588
    %v2818 = vadd.f32 %v2789, %v2594
    %v2819 = vadd.f32 %v2794, %v2598
    %v2820 = vadd.f32 %v2799, %v2604
    %v2821 = vadd.f32 %v2804, %v2608
    %v2822 = vadd.f32 %v2809, %v2614
    %v2823 = vadd.f32 %v2814, %v2618
    %v2824 = vsub.f32 %v2816, %v2768
    %v2825 = vsub.f32 %v2817, %v2769
    %v2826 = vsub.f32 %v2818, %v2770
    %v2827 = vsub.f32 %v2819, %v2771
    %v2828 = vsub.f32 %v2820, %v2772
    %v2829 = vsub.f32 %v2821, %v2773
    %v2830 = vsub.f32 %v2822, %v2774
    %v2831 = vsub.f32 %v2823, %v2775
    %2832 = vst [vmem:[#allocation11] sm:$0xff] %v2824
    %2833 = vst [vmem:[#allocation11 + $0x18] sm:$0xff] %v2825
    %2834 = vst [vmem:[#allocation11 + $0x30] sm:$0xff] %v2826
    %2835 = vst [vmem:[#allocation11 + $0x48] sm:$0xff] %v2827
    %2836 = vst [vmem:[#allocation11 + $0x60] sm:$0xff] %v2828
    %2837 = vst [vmem:[#allocation11 + $0x78] sm:$0xff] %v2829
    %2838 = vst [vmem:[#allocation11 + $0x90] sm:$0xff] %v2830
    %2839 = vst [vmem:[#allocation11 + $0xa8] sm:$0xff] %v2831
    %2840 = vadd.xlane.f32.xlu0 %v2586
    %v2841 = vpop.xlane.xlu0 %2840
    %2842 = vadd.xlane.f32.xlu0 %v2590
    %v2843 = vpop.xlane.xlu0 %2842
    %2844 = vadd.xlane.f32.xlu0 %v2596
    %v2845 = vpop.xlane.xlu0 %2844
    %2846 = vadd.xlane.f32.xlu0 %v2600
    %v2847 = vpop.xlane.xlu0 %2846
    %2848 = vadd.xlane.f32.xlu0 %v2606
    %v2849 = vpop.xlane.xlu0 %2848
    %2850 = vadd.xlane.f32.xlu0 %v2610
    %v2851 = vpop.xlane.xlu0 %2850
    %2852 = vadd.xlane.f32.xlu0 %v2616
    %v2853 = vpop.xlane.xlu0 %2852
    %2854 = vadd.xlane.f32.xlu0 %v2620
    %v2855 = vpop.xlane.xlu0 %2854
    %v2856 = vmul.f32 %v2841, 0.16666667
    %v2857 = vmul.f32 %v2843, 0.16666667
    %v2858 = vmul.f32 %v2845, 0.16666667
    %v2859 = vmul.f32 %v2847, 0.16666667
    %v2860 = vmul.f32 %v2849, 0.16666667
    %v2861 = vmul.f32 %v2851, 0.16666667
    %v2862 = vmul.f32 %v2853, 0.16666667
    %v2863 = vmul.f32 %v2855, 0.16666667
    %v2864 = vadd.f32 %v2779, %v2586
    %v2865 = vadd.f32 %v2784, %v2590
    %v2866 = vadd.f32 %v2789, %v2596
    %v2867 = vadd.f32 %v2794, %v2600
    %v2868 = vadd.f32 %v2799, %v2606
    %v2869 = vadd.f32 %v2804, %v2610
    %v2870 = vadd.f32 %v2809, %v2616
    %v2871 = vadd.f32 %v2814, %v2620
    %v2872 = vsub.f32 %v2864, %v2856
    %v2873 = vsub.f32 %v2865, %v2857
    %v2874 = vsub.f32 %v2866, %v2858
    %v2875 = vsub.f32 %v2867, %v2859
    %v2876 = vsub.f32 %v2868, %v2860
    %v2877 = vsub.f32 %v2869, %v2861
    %v2878 = vsub.f32 %v2870, %v2862
    %v2879 = vsub.f32 %v2871, %v2863
    %2880 = vst [vmem:[#allocation11 + $0x8] sm:$0xff] %v2872
    %2881 = vst [vmem:[#allocation11 + $0x20] sm:$0xff] %v2873
    %2882 = vst [vmem:[#allocation11 + $0x38] sm:$0xff] %v2874
    %2883 = vst [vmem:[#allocation11 + $0x50] sm:$0xff] %v2875
    %2884 = vst [vmem:[#allocation11 + $0x68] sm:$0xff] %v2876
    %2885 = vst [vmem:[#allocation11 + $0x80] sm:$0xff] %v2877
    %2886 = vst [vmem:[#allocation11 + $0x98] sm:$0xff] %v2878
    %2887 = vst [vmem:[#allocation11 + $0xb0] sm:$0xff] %v2879
    %2888 = vadd.xlane.f32.xlu0 %v2722
    %v2889 = vpop.xlane.xlu0 %2888
    %2890 = vadd.xlane.f32.xlu0 %v2725
    %v2891 = vpop.xlane.xlu0 %2890
    %2892 = vadd.xlane.f32.xlu0 %v2730
    %v2893 = vpop.xlane.xlu0 %2892
    %2894 = vadd.xlane.f32.xlu0 %v2733
    %v2895 = vpop.xlane.xlu0 %2894
    %2896 = vadd.xlane.f32.xlu0 %v2738
    %v2897 = vpop.xlane.xlu0 %2896
    %2898 = vadd.xlane.f32.xlu0 %v2741
    %v2899 = vpop.xlane.xlu0 %2898
    %2900 = vadd.xlane.f32.xlu0 %v2746
    %v2901 = vpop.xlane.xlu0 %2900
    %2902 = vadd.xlane.f32.xlu0 %v2749
    %v2903 = vpop.xlane.xlu0 %2902
    %v2904 = vmul.f32 %v2889, 0.25
    %v2905 = vmul.f32 %v2891, 0.25
    %v2906 = vmul.f32 %v2893, 0.25
    %v2907 = vmul.f32 %v2895, 0.25
    %v2908 = vmul.f32 %v2897, 0.25
    %v2909 = vmul.f32 %v2899, 0.25
    %v2910 = vmul.f32 %v2901, 0.25
    %v2911 = vmul.f32 %v2903, 0.25
    %v2912 = vadd.f32 %v2779, %v2722
    %v2913 = vadd.f32 %v2784, %v2725
    %v2914 = vadd.f32 %v2789, %v2730
    %v2915 = vadd.f32 %v2794, %v2733
    %v2916 = vadd.f32 %v2799, %v2738
    %v2917 = vadd.f32 %v2804, %v2741
    %v2918 = vadd.f32 %v2809, %v2746
    %v2919 = vadd.f32 %v2814, %v2749
    %v2920 = vsub.f32 %v2912, %v2904
    %v2921 = vsub.f32 %v2913, %v2905
    %v2922 = vsub.f32 %v2914, %v2906
    %v2923 = vsub.f32 %v2915, %v2907
    %v2924 = vsub.f32 %v2916, %v2908
    %v2925 = vsub.f32 %v2917, %v2909
    %v2926 = vsub.f32 %v2918, %v2910
    %v2927 = vsub.f32 %v2919, %v2911
    %2928 = vst [vmem:[#allocation11 + $0x10] sm:$0xff] %v2920
    %2929 = vst [vmem:[#allocation11 + $0x28] sm:$0xff] %v2921
    %2930 = vst [vmem:[#allocation11 + $0x40] sm:$0xff] %v2922
    %2931 = vst [vmem:[#allocation11 + $0x58] sm:$0xff] %v2923
    %2932 = vst [vmem:[#allocation11 + $0x70] sm:$0xff] %v2924
    %2933 = vst [vmem:[#allocation11 + $0x88] sm:$0xff] %v2925
    %2934 = vst [vmem:[#allocation11 + $0xa0] sm:$0xff] %v2926
    %2935 = vst [vmem:[#allocation11 + $0xb8] sm:$0xff] %v2927
    // Predicated region
    $region66: #{tpu_custom_call.1} parent=1 // pred_check
      _
    $region67: #{tpu_custom_call.1} parent=1 // pred_check_branch
      %2937 = sbr.rel (0) target = $region69
    $region68: #{tpu_custom_call.1} parent=1 // pred_region
      %s2939 = ssub.s32 3072, 3072
      %2940 = vsyncadd [#allocation4], %s2939
      %s2941 = sshll.u32 [#allocation11], 4
      %s2942 = int_to_ptr.vmem [resolvable:$true] %s2941
      %2947 = dma.vmem_to_hbm [thread:$0]  %s2942, 3072, %s11, [#allocation4], 384, 384, 24
    $region69: #{tpu_custom_call.1} parent=1 // pred_fallthru
      _
    // Predicated region
    $region70: #{tpu_custom_call.1} parent=1 // pred_check
      _
    $region71: #{tpu_custom_call.1} parent=1 // pred_check_branch
      %2949 = sbr.rel (0) target = $region73
    $region72: #{tpu_custom_call.1} parent=1 // pred_region
      %2950 = dma.done [#allocation4], 3072
    $region73: #{tpu_custom_call.1} parent=1 // pred_fallthru
      _
    %2951 = vsyncpa [#allocation3], 1
    %2952 = vsyncpa [#allocation6], 1
    %2953 = vsyncpa [#allocation9], 1
    %2954 = vsyncpa [#allocation4], 1

</llo_original>
